<compile_context>
chip_gen: v5e
topology: v5e:2x2
jax: 0.10.0
libtpu: 0.0.40
codegen_flags: <defaults>
</compile_context>

<pallas_src>
import functools

import jax
import jax.numpy as jnp
from jax import lax
from jax.experimental import pallas as pl
from jax.experimental.pallas import tpu as pltpu


# ----------------------------------------------------------------------------
# Kernel 1: both bidirectional GRU encoders, one grid point per encoder.
# ----------------------------------------------------------------------------
def bigru_pair_kernel(tokf_ref, tokb_ref, emb_ref,
                      wih_ref, bi_ref, whh_ref, bhn_ref,
                      out_ref,
                      gir_scr, giz_scr, gin_scr,
                      *, seq_len, batch, hidden, vocab, out_lanes):
    T, B, H, V = seq_len, batch, hidden, vocab
    H2 = 2 * H
    f32 = jnp.float32
    bf16 = jnp.bfloat16

    # ---- in-kernel embedding lookup via one-hot MXU matmul -----------------
    emb = emb_ref[0]                                   # (V, E) bf16
    tok_f = tokf_ref[0]                                # (T*B, 1) int32, fwd time order
    tok_b = tokb_ref[0]                                # (T*B, 1) int32, reversed time
    iota_v = lax.broadcasted_iota(jnp.int32, (T * B, V), 1)
    oh_f = jnp.where(iota_v == tok_f, 1.0, 0.0).astype(bf16)
    oh_b = jnp.where(iota_v == tok_b, 1.0, 0.0).astype(bf16)
    x_f = jnp.dot(oh_f, emb, preferred_element_type=f32)        # (T*B, E)
    x_b = jnp.dot(oh_b, emb, preferred_element_type=f32)        # (T*B, E)
    x_both = jnp.concatenate([x_f, x_b], axis=1).astype(bf16)   # (T*B, 2E)

    # ---- hoisted input projections: one matmul per gate, all timesteps -----
    # (bias_hh for the r/z gates is pre-folded into bi_ref by the wrapper)
    gir_scr[...] = jnp.dot(x_both, wih_ref[0, 0], preferred_element_type=f32) + bi_ref[0, 0]
    giz_scr[...] = jnp.dot(x_both, wih_ref[0, 1], preferred_element_type=f32) + bi_ref[0, 1]
    gin_scr[...] = jnp.dot(x_both, wih_ref[0, 2], preferred_element_type=f32) + bi_ref[0, 2]

    w_r = whh_ref[0, 0]                                # (2H, 2H) bf16, block-diag(fwd,bwd)
    w_z = whh_ref[0, 1]
    w_n = whh_ref[0, 2]
    bhn = jnp.broadcast_to(bhn_ref[0], (B, H2))        # broadcast hoisted out of loop

    # ---- fused fwd+bwd recurrence, fully unrolled (T static & small) -------
    h = jnp.zeros((B, H2), f32)                        # lanes = [h_fwd | h_bwd]
    for t in range(T):
        lo = t * B
        gi_r = gir_scr[lo:lo + B, :]
        gi_z = giz_scr[lo:lo + B, :]
        gi_n = gin_scr[lo:lo + B, :]
        hb = h.astype(bf16)
        gh_r = jnp.dot(hb, w_r, preferred_element_type=f32)
        gh_z = jnp.dot(hb, w_z, preferred_element_type=f32)
        gh_n = jnp.dot(hb, w_n, preferred_element_type=f32) + bhn
        r = jax.nn.sigmoid(gi_r + gh_r)
        z = jax.nn.sigmoid(gi_z + gh_z)
        n = jnp.tanh(gi_n + r * gh_n)
        h = n + z * (h - n)                            # == (1-z)*n + z*h

    # final h is already concat(h_fwd_final, h_bwd_final) = encoder output
    pad = out_lanes - H2
    if pad > 0:                                        # lane-dense (128-wide) store
        h = jnp.concatenate([h, jnp.zeros((B, pad), f32)], axis=1)
    out_ref[0] = h


# ----------------------------------------------------------------------------
# Kernel 2: fusion head (system_predictor -> softmax/argmax -> embedding ->
#           out_layer -> softmax).  Dropout = identity (eval semantics).
# ----------------------------------------------------------------------------
def fusion_head_kernel(enc_ref, wsys_ref, bsys_ref, demb_ref,
                       wo1_ref, wo2_ref, bo_ref,
                       out_ref, sys_ref, *, out_size, sys_size, pad_lanes):
    f32 = jnp.float32
    bf16 = jnp.bfloat16
    B = enc_ref.shape[1]
    S = sys_size

    sys_enc = enc_ref[0]                               # (B, 128) zero-padded beyond 2H
    to_cls = enc_ref[1]

    # sys_da_prediction = softmax(system_predictor(system_enc), dim=1)
    sys_logits = jnp.dot(sys_enc.astype(bf16), wsys_ref[...],
                         preferred_element_type=f32) + bsys_ref[...]
    m1 = jnp.max(sys_logits, axis=1, keepdims=True)
    e1 = jnp.exp(sys_logits - m1)
    sys_probs = e1 / jnp.sum(e1, axis=1, keepdims=True)

    # argmax from the logits (reuses the softmax row max); first index on ties
    col = lax.broadcasted_iota(jnp.int32, (B, S), 1)
    pred = jnp.min(jnp.where(sys_logits == m1, col, S), axis=1, keepdims=True)
    one_hot = jnp.where(col == pred, 1.0, 0.0).astype(bf16)      # (B, S)

    # prev_da = embedding(pred_sys_da) as a one-hot matmul gather
    prev_da = jnp.dot(one_hot, demb_ref[0:S, :], preferred_element_type=f32)  # (B, 30)

    # out = softmax(out_layer(cat(to_classify, prev_da))); concat as split matmul
    logits = (jnp.dot(to_cls.astype(bf16), wo1_ref[...], preferred_element_type=f32)
              + jnp.dot(prev_da.astype(bf16), wo2_ref[...], preferred_element_type=f32)
              + bo_ref[...])
    m2 = jnp.max(logits, axis=1, keepdims=True)
    e2 = jnp.exp(logits - m2)
    out_probs = e2 / jnp.sum(e2, axis=1, keepdims=True)

    # lane-dense padded stores; the wrapper slices the real widths
    out_ref[...] = jnp.concatenate(
        [out_probs, jnp.zeros((B, pad_lanes - out_size), f32)], axis=1)
    sys_ref[...] = jnp.concatenate(
        [sys_probs, jnp.zeros((B, pad_lanes - sys_size), f32)], axis=1)


# ----------------------------------------------------------------------------
# Parameter preparation (done once, outside the forward pass).
# ----------------------------------------------------------------------------
def _block_diag(a, b):
    m, n = a.shape
    p, q = b.shape
    top = jnp.concatenate([a, jnp.zeros((m, q), a.dtype)], axis=1)
    bot = jnp.concatenate([jnp.zeros((p, n), b.dtype), b], axis=1)
    return jnp.concatenate([top, bot], axis=0)


def _split_gates(w, H):
    # PyTorch packs GRU gates as rows [r; z; n], each of size H.
    return [w[g * H:(g + 1) * H] for g in range(3)]


def prepare_encoder_params(p, hidden):
    """PyTorch-convention BiGRU params -> fused block-diagonal kernel layout."""
    H = hidden
    wih_f = _split_gates(p["w_ih_f"], H); wih_b = _split_gates(p["w_ih_b"], H)
    whh_f = _split_gates(p["w_hh_f"], H); whh_b = _split_gates(p["w_hh_b"], H)
    bih_f = _split_gates(p["b_ih_f"], H); bih_b = _split_gates(p["b_ih_b"], H)
    bhh_f = _split_gates(p["b_hh_f"], H); bhh_b = _split_gates(p["b_hh_b"], H)

    W_ih = jnp.stack([_block_diag(wih_f[g].T, wih_b[g].T) for g in range(3)])  # (3,2E,2H)
    W_hh = jnp.stack([_block_diag(whh_f[g].T, whh_b[g].T) for g in range(3)])  # (3,2H,2H)

    def cat(bf, bb):
        return jnp.concatenate([bf, bb])[None, :]                              # (1, 2H)

    # fold b_hh into the hoisted projections for the r/z gates
    b_i = jnp.stack([cat(bih_f[0] + bhh_f[0], bih_b[0] + bhh_b[0]),
                     cat(bih_f[1] + bhh_f[1], bih_b[1] + bhh_b[1]),
                     cat(bih_f[2], bih_b[2])])                                 # (3, 1, 2H)
    b_hn = cat(bhh_f[2], bhh_b[2])                                             # (1, 2H)

    return dict(emb=p["embedding"].astype(jnp.bfloat16),
                W_ih=W_ih.astype(jnp.bfloat16),
                W_hh=W_hh.astype(jnp.bfloat16),
                b_i=b_i.astype(jnp.float32),
                b_hn=b_hn.astype(jnp.float32))


def prepare_encoder_pair_params(enc1_p, enc2_p, hidden):
    e1 = prepare_encoder_params(enc1_p, hidden)   # encoder_layer1
    e2 = prepare_encoder_params(enc2_p, hidden)   # input_encoder
    kp = {k: jnp.stack([e1[k], e2[k]]) for k in e1}
    kp["hidden"] = hidden
    return kp


def prepare_fusion_params(fp, two_h, enc_lanes):
    sys_out = fp["w_sys"].shape[0]
    out = fp["w_out"].shape[0]
    # pad weight rows to the padded encoder-output lane width (zero rows)
    w_sys = jnp.zeros((enc_lanes, sys_out), jnp.float32).at[:two_h].set(fp["w_sys"].T)
    w_o1 = jnp.zeros((enc_lanes, out), jnp.float32).at[:two_h].set(fp["w_out"][:, :two_h].T)
    w_o2 = fp["w_out"][:, two_h:].T                                            # (30, OUT)
    return dict(w_sys=w_sys.astype(jnp.bfloat16),
                b_sys=fp["b_sys"][None, :].astype(jnp.float32),
                da_emb=fp["da_emb"].astype(jnp.bfloat16),
                w_out1=w_o1.astype(jnp.bfloat16),
                w_out2=w_o2.astype(jnp.bfloat16),
                b_out=fp["b_out"][None, :].astype(jnp.float32))


# ----------------------------------------------------------------------------
# Wrappers
# ----------------------------------------------------------------------------
def _stacked_spec(shape):
    zeros = (0,) * len(shape)

    def idx(e):
        return (e,) + zeros

    return pl.BlockSpec((1,) + tuple(shape), idx)


def bigru_encode_pair(tok_sys, tok_cls, kp):
    """Run both BiGRU encoders in one pallas_call (one grid point per encoder).

    tok_sys = src[-3] for encoder_layer1, tok_cls = src[-2] for input_encoder.
    Returns (2, B, ENC_LANES) f32: [0]=system_enc, [1]=to_classify (zero padded
    beyond 2H lanes).
    """
    T, B = tok_sys.shape
    H = kp["hidden"]
    V, E = kp["emb"].shape[1], kp["emb"].shape[2]
    H2 = 2 * H
    enc_lanes = max(128, ((H2 + 127) // 128) * 128)

    def flat(tok):
        return tok.reshape(T * B, 1).astype(jnp.int32)

    tok_f = jnp.stack([flat(tok_sys), flat(tok_cls)])              # (2, T*B, 1)
    tok_b = jnp.stack([flat(tok_sys[::-1]), flat(tok_cls[::-1])])  # time-reversed

    kernel = functools.partial(bigru_pair_kernel, seq_len=T, batch=B,
                               hidden=H, vocab=V, out_lanes=enc_lanes)
    # TODO(synk): for large T/B, add a batch grid axis + explicit
    # vmem_limit_bytes instead of keeping all activations VMEM-resident.
    return pl.pallas_call(
        kernel,
        out_shape=jax.ShapeDtypeStruct((2, B, enc_lanes), jnp.float32),
        grid=(2,),
        in_specs=[
            _stacked_spec((T * B, 1)),        # tokens, forward time order
            _stacked_spec((T * B, 1)),        # tokens, reversed time order
            _stacked_spec((V, E)),            # token embedding
            _stacked_spec((3, 2 * E, H2)),    # W_ih per gate (block-diag f/b)
            _stacked_spec((3, 1, H2)),        # b_i per gate (bhh folded for r,z)
            _stacked_spec((3, H2, H2)),       # W_hh per gate (block-diag f/b)
            _stacked_spec((1, H2)),           # b_hh for the n gate
        ],
        out_specs=_stacked_spec((B, enc_lanes)),
        scratch_shapes=[pltpu.VMEM((T * B, H2), jnp.float32)] * 3,
        compiler_params=pltpu.CompilerParams(
            dimension_semantics=("parallel",)),   # 2 encoders across v7x cores
    )(tok_f, tok_b, kp["emb"], kp["W_ih"], kp["b_i"], kp["W_hh"], kp["b_hn"])


def fusion_head(enc_pair, fkp):
    B = enc_pair.shape[1]
    out_size = fkp["b_out"].shape[1]
    sys_size = fkp["b_sys"].shape[1]
    pad_lanes = 128
    kernel = functools.partial(fusion_head_kernel, out_size=out_size,
                               sys_size=sys_size, pad_lanes=pad_lanes)
    vmem = pl.BlockSpec(memory_space=pltpu.MemorySpace.VMEM)
    out_slab, sys_slab = pl.pallas_call(
        kernel,
        out_shape=(jax.ShapeDtypeStruct((B, pad_lanes), jnp.float32),
                   jax.ShapeDtypeStruct((B, pad_lanes), jnp.float32)),
        in_specs=[vmem] * 7,
        out_specs=(vmem, vmem),
    )(enc_pair, fkp["w_sys"], fkp["b_sys"], fkp["da_emb"],
      fkp["w_out1"], fkp["w_out2"], fkp["b_out"])
    return out_slab[:, :out_size], sys_slab[:, :sys_size]


def bigru_fusion_forward(src, trg, speakers, lengths, enc_kp, fusion_kp,
                         teacher_forcing_ratio=0.5):
    # trg / speakers / lengths / teacher_forcing_ratio are unused by the
    # reference forward (only trg_len / trg_vocab_size are computed & dropped).
    del trg, speakers, lengths, teacher_forcing_ratio
    enc_pair = bigru_encode_pair(src[-3], src[-2], enc_kp)
    output, sys_da_prediction = fusion_head(enc_pair, fusion_kp)
    return output, sys_da_prediction


# ----------------------------------------------------------------------------
if __name__ == "__main__":
    V, E, H = 50, 32, 32            # vocab, token-embedding dim, GRU hidden
    T, B = 8, 8                     # seq_len, batch
    NUM_TURNS = 4                   # need >= 3 so src[-2], src[-3] exist
    D = 2 * H                       # encoder output_dim (BiGRU concat)
    SYS_OUT = 16                    # system_output_size (< 20 embedding rows)
    OUT = 10                        # output_size

    key = jax.random.PRNGKey(0)
    keys = jax.random.split(key, 32)

    def nrm(k, shape):
        return 0.1 * jax.random.normal(k, shape, jnp.float32)

    def make_encoder_torch_params(ks):
        # PyTorch nn.GRU(bidirectional) conventions: weight (3H, in), bias (3H,)
        return dict(
            embedding=nrm(ks[0], (V, E)),
            w_ih_f=nrm(ks[1], (3 * H, E)), w_hh_f=nrm(ks[2], (3 * H, H)),
            b_ih_f=nrm(ks[3], (3 * H,)), b_hh_f=nrm(ks[4], (3 * H,)),
            w_ih_b=nrm(ks[5], (3 * H, E)), w_hh_b=nrm(ks[6], (3 * H, H)),
            b_ih_b=nrm(ks[7], (3 * H,)), b_hh_b=nrm(ks[8], (3 * H,)),
        )

    enc1_torch = make_encoder_torch_params(keys[0:9])     # first_layer_encoder
    enc2_torch = make_encoder_torch_params(keys[9:18])    # input_encoder

    fusion_torch = dict(
        w_sys=nrm(keys[18], (SYS_OUT, D)), b_sys=nrm(keys[19], (SYS_OUT,)),
        w_out=nrm(keys[20], (OUT, D + 30)), b_out=nrm(keys[21], (OUT,)),
        da_emb=nrm(keys[22], (20, 30)),                    # nn.Embedding(20, 30)
    )

    enc_kp = prepare_encoder_pair_params(enc1_torch, enc2_torch, H)
    enc_lanes = max(128, ((D + 127) // 128) * 128)
    fusion_kp = prepare_fusion_params(fusion_torch, two_h=D, enc_lanes=enc_lanes)

    src = jax.random.randint(keys[24], (NUM_TURNS, T, B), 0, V, dtype=jnp.int32)
    trg = jax.random.randint(keys[25], (T, B), 0, OUT, dtype=jnp.int32)
    speakers = jnp.zeros((B,), jnp.int32)
    lengths = jnp.full((B,), T, jnp.int32)

    output, sys_da_prediction = bigru_fusion_forward(
        src, trg, speakers, lengths, enc_kp, fusion_kp)
    jax.block_until_ready((output, sys_da_prediction))

    assert output.shape == (B, OUT)
    assert sys_da_prediction.shape == (B, SYS_OUT)
    assert bool(jnp.all(jnp.isfinite(output)))
    assert jnp.allclose(jnp.sum(output, axis=1), 1.0, atol=1e-4)
    assert jnp.allclose(jnp.sum(sys_da_prediction, axis=1), 1.0, atol=1e-4)
    print("KERNEL_OK")
</pallas_src>

<mosaic_0001>
module attributes {stable_mosaic.version = 11 : i64} {
  func.func @bigru_pair_kernel(%arg0: i32, %arg1: memref<1x64x1xi32, #tpu.memory_space<vmem>>, %arg2: memref<1x64x1xi32, #tpu.memory_space<vmem>>, %arg3: memref<1x50x32xbf16, #tpu.memory_space<vmem>>, %arg4: memref<1x3x64x64xbf16, #tpu.memory_space<vmem>>, %arg5: memref<1x3x1x64xf32, #tpu.memory_space<vmem>>, %arg6: memref<1x3x64x64xbf16, #tpu.memory_space<vmem>>, %arg7: memref<1x1x64xf32, #tpu.memory_space<vmem>>, %arg8: memref<1x8x128xf32, #tpu.memory_space<vmem>>, %arg9: memref<64x64xf32, #tpu.memory_space<vmem>>, %arg10: memref<64x64xf32, #tpu.memory_space<vmem>>, %arg11: memref<64x64xf32, #tpu.memory_space<vmem>>) attributes {dimension_semantics = [#tpu.dimension_semantics<parallel>], iteration_bounds = array<i64: 2>, scalar_prefetch = 0 : i64, scratch_operands = 3 : i64, tpu.core_type = #tpu.core_type<tc>, window_params = [{transform_indices = @transform_0, window_bounds = array<i64: 1, 64, 1>}, {transform_indices = @transform_1, window_bounds = array<i64: 1, 64, 1>}, {transform_indices = @transform_2, window_bounds = array<i64: 1, 50, 32>}, {transform_indices = @transform_3, window_bounds = array<i64: 1, 3, 64, 64>}, {transform_indices = @transform_4, window_bounds = array<i64: 1, 3, 1, 64>}, {transform_indices = @transform_5, window_bounds = array<i64: 1, 3, 64, 64>}, {transform_indices = @transform_6, window_bounds = array<i64: 1, 1, 64>}, {transform_indices = @transform_7, window_bounds = array<i64: 1, 8, 128>}]} {
    %c0 = arith.constant 0 : index
    %c0_0 = arith.constant 0 : index
    %c0_1 = arith.constant 0 : index
    %0 = vector.load %arg3[%c0, %c0_0, %c0_1] : memref<1x50x32xbf16, #tpu.memory_space<vmem>>, vector<1x50x32xbf16>
    %1 = vector.shape_cast %0 : vector<1x50x32xbf16> to vector<50x32xbf16>
    %c0_2 = arith.constant 0 : index
    %c0_3 = arith.constant 0 : index
    %c0_4 = arith.constant 0 : index
    %2 = vector.load %arg1[%c0_2, %c0_3, %c0_4] : memref<1x64x1xi32, #tpu.memory_space<vmem>>, vector<1x64x1xi32>
    %3 = vector.shape_cast %2 : vector<1x64x1xi32> to vector<64x1xi32>
    %c0_5 = arith.constant 0 : index
    %c0_6 = arith.constant 0 : index
    %c0_7 = arith.constant 0 : index
    %4 = vector.load %arg2[%c0_5, %c0_6, %c0_7] : memref<1x64x1xi32, #tpu.memory_space<vmem>>, vector<1x64x1xi32>
    %5 = vector.shape_cast %4 : vector<1x64x1xi32> to vector<64x1xi32>
    %6 = tpu.iota {dimensions = array<i32: 1>} : vector<64x50xi32>
    %7 = vector.broadcast %3 : vector<64x1xi32> to vector<64x50xi32>
    %8 = arith.cmpi eq, %6, %7 : vector<64x50xi32>
    %cst = arith.constant 1.000000e+00 : f32
    %cst_8 = arith.constant 0.000000e+00 : f32
    %9 = vector.broadcast %cst : f32 to vector<64x50xf32>
    %10 = vector.broadcast %cst_8 : f32 to vector<64x50xf32>
    %11 = arith.select %8, %9, %10 : vector<64x50xi1>, vector<64x50xf32>
    %12 = arith.truncf %11 : vector<64x50xf32> to vector<64x50xbf16>
    %13 = vector.broadcast %5 : vector<64x1xi32> to vector<64x50xi32>
    %14 = arith.cmpi eq, %6, %13 : vector<64x50xi32>
    %cst_9 = arith.constant 1.000000e+00 : f32
    %cst_10 = arith.constant 0.000000e+00 : f32
    %15 = vector.broadcast %cst_9 : f32 to vector<64x50xf32>
    %16 = vector.broadcast %cst_10 : f32 to vector<64x50xf32>
    %17 = arith.select %14, %15, %16 : vector<64x50xi1>, vector<64x50xf32>
    %18 = arith.truncf %17 : vector<64x50xf32> to vector<64x50xbf16>
    %cst_11 = arith.constant dense<0.000000e+00> : vector<64x32xf32>
    %19 = tpu.matmul %12, %1, %cst_11 {dimension_numbers = #tpu.dot_dimension_numbers<[1], [0], [0], [1], [0, 0, 1, 1], [], []>} : vector<64x50xbf16>, vector<50x32xbf16>, vector<64x32xf32> -> vector<64x32xf32>
    %cst_12 = arith.constant dense<0.000000e+00> : vector<64x32xf32>
    %20 = tpu.matmul %18, %1, %cst_12 {dimension_numbers = #tpu.dot_dimension_numbers<[1], [0], [0], [1], [0, 0, 1, 1], [], []>} : vector<64x50xbf16>, vector<50x32xbf16>, vector<64x32xf32> -> vector<64x32xf32>
    %21 = tpu.concatenate %19, %20 in 1 : vector<64x32xf32>, vector<64x32xf32> -> vector<64x64xf32>
    %22 = arith.truncf %21 : vector<64x64xf32> to vector<64x64xbf16>
    %c0_13 = arith.constant 0 : index
    %c0_14 = arith.constant 0 : index
    %c0_15 = arith.constant 0 : index
    %c0_16 = arith.constant 0 : index
    %23 = vector.load %arg4[%c0_13, %c0_14, %c0_15, %c0_16] : memref<1x3x64x64xbf16, #tpu.memory_space<vmem>>, vector<1x1x64x64xbf16>
    %24 = vector.shape_cast %23 : vector<1x1x64x64xbf16> to vector<64x64xbf16>
    %cst_17 = arith.constant dense<0.000000e+00> : vector<64x64xf32>
    %25 = tpu.matmul %22, %24, %cst_17 {dimension_numbers = #tpu.dot_dimension_numbers<[1], [0], [0], [1], [0, 0, 1, 1], [], []>} : vector<64x64xbf16>, vector<64x64xbf16>, vector<64x64xf32> -> vector<64x64xf32>
    %c0_18 = arith.constant 0 : index
    %c0_19 = arith.constant 0 : index
    %c0_20 = arith.constant 0 : index
    %c0_21 = arith.constant 0 : index
    %26 = vector.load %arg5[%c0_18, %c0_19, %c0_20, %c0_21] : memref<1x3x1x64xf32, #tpu.memory_space<vmem>>, vector<1x1x1x64xf32>
    %27 = vector.shape_cast %26 : vector<1x1x1x64xf32> to vector<1x64xf32>
    %28 = vector.broadcast %27 : vector<1x64xf32> to vector<64x64xf32>
    %29 = arith.addf %25, %28 : vector<64x64xf32>
    %c0_22 = arith.constant 0 : index
    %c0_23 = arith.constant 0 : index
    %30 = vector.load %arg9[%c0_22, %c0_23] : memref<64x64xf32, #tpu.memory_space<vmem>>, vector<64x64xf32>
    tpu.vector_store %arg9[%c0_22, %c0_23], %29 {strides = array<i32>} : memref<64x64xf32, #tpu.memory_space<vmem>>, vector<64x64xf32>,
    %c0_24 = arith.constant 0 : index
    %c1 = arith.constant 1 : index
    %c0_25 = arith.constant 0 : index
    %c0_26 = arith.constant 0 : index
    %31 = vector.load %arg4[%c0_24, %c1, %c0_25, %c0_26] : memref<1x3x64x64xbf16, #tpu.memory_space<vmem>>, vector<1x1x64x64xbf16>
    %32 = vector.shape_cast %31 : vector<1x1x64x64xbf16> to vector<64x64xbf16>
    %cst_27 = arith.constant dense<0.000000e+00> : vector<64x64xf32>
    %33 = tpu.matmul %22, %32, %cst_27 {dimension_numbers = #tpu.dot_dimension_numbers<[1], [0], [0], [1], [0, 0, 1, 1], [], []>} : vector<64x64xbf16>, vector<64x64xbf16>, vector<64x64xf32> -> vector<64x64xf32>
    %c0_28 = arith.constant 0 : index
    %c1_29 = arith.constant 1 : index
    %c0_30 = arith.constant 0 : index
    %c0_31 = arith.constant 0 : index
    %34 = vector.load %arg5[%c0_28, %c1_29, %c0_30, %c0_31] : memref<1x3x1x64xf32, #tpu.memory_space<vmem>>, vector<1x1x1x64xf32>
    %35 = vector.shape_cast %34 : vector<1x1x1x64xf32> to vector<1x64xf32>
    %36 = vector.broadcast %35 : vector<1x64xf32> to vector<64x64xf32>
    %37 = arith.addf %33, %36 : vector<64x64xf32>
    %c0_32 = arith.constant 0 : index
    %c0_33 = arith.constant 0 : index
    %38 = vector.load %arg10[%c0_32, %c0_33] : memref<64x64xf32, #tpu.memory_space<vmem>>, vector<64x64xf32>
    tpu.vector_store %arg10[%c0_32, %c0_33], %37 {strides = array<i32>} : memref<64x64xf32, #tpu.memory_space<vmem>>, vector<64x64xf32>,
    %c0_34 = arith.constant 0 : index
    %c2 = arith.constant 2 : index
    %c0_35 = arith.constant 0 : index
    %c0_36 = arith.constant 0 : index
    %39 = vector.load %arg4[%c0_34, %c2, %c0_35, %c0_36] : memref<1x3x64x64xbf16, #tpu.memory_space<vmem>>, vector<1x1x64x64xbf16>
    %40 = vector.shape_cast %39 : vector<1x1x64x64xbf16> to vector<64x64xbf16>
    %cst_37 = arith.constant dense<0.000000e+00> : vector<64x64xf32>
    %41 = tpu.matmul %22, %40, %cst_37 {dimension_numbers = #tpu.dot_dimension_numbers<[1], [0], [0], [1], [0, 0, 1, 1], [], []>} : vector<64x64xbf16>, vector<64x64xbf16>, vector<64x64xf32> -> vector<64x64xf32>
    %c0_38 = arith.constant 0 : index
    %c2_39 = arith.constant 2 : index
    %c0_40 = arith.constant 0 : index
    %c0_41 = arith.constant 0 : index
    %42 = vector.load %arg5[%c0_38, %c2_39, %c0_40, %c0_41] : memref<1x3x1x64xf32, #tpu.memory_space<vmem>>, vector<1x1x1x64xf32>
    %43 = vector.shape_cast %42 : vector<1x1x1x64xf32> to vector<1x64xf32>
    %44 = vector.broadcast %43 : vector<1x64xf32> to vector<64x64xf32>
    %45 = arith.addf %41, %44 : vector<64x64xf32>
    %c0_42 = arith.constant 0 : index
    %c0_43 = arith.constant 0 : index
    %46 = vector.load %arg11[%c0_42, %c0_43] : memref<64x64xf32, #tpu.memory_space<vmem>>, vector<64x64xf32>
    tpu.vector_store %arg11[%c0_42, %c0_43], %45 {strides = array<i32>} : memref<64x64xf32, #tpu.memory_space<vmem>>, vector<64x64xf32>,
    %c0_44 = arith.constant 0 : index
    %c0_45 = arith.constant 0 : index
    %c0_46 = arith.constant 0 : index
    %c0_47 = arith.constant 0 : index
    %47 = vector.load %arg6[%c0_44, %c0_45, %c0_46, %c0_47] : memref<1x3x64x64xbf16, #tpu.memory_space<vmem>>, vector<1x1x64x64xbf16>
    %48 = vector.shape_cast %47 : vector<1x1x64x64xbf16> to vector<64x64xbf16>
    %c0_48 = arith.constant 0 : index
    %c1_49 = arith.constant 1 : index
    %c0_50 = arith.constant 0 : index
    %c0_51 = arith.constant 0 : index
    %49 = vector.load %arg6[%c0_48, %c1_49, %c0_50, %c0_51] : memref<1x3x64x64xbf16, #tpu.memory_space<vmem>>, vector<1x1x64x64xbf16>
    %50 = vector.shape_cast %49 : vector<1x1x64x64xbf16> to vector<64x64xbf16>
    %c0_52 = arith.constant 0 : index
    %c2_53 = arith.constant 2 : index
    %c0_54 = arith.constant 0 : index
    %c0_55 = arith.constant 0 : index
    %51 = vector.load %arg6[%c0_52, %c2_53, %c0_54, %c0_55] : memref<1x3x64x64xbf16, #tpu.memory_space<vmem>>, vector<1x1x64x64xbf16>
    %52 = vector.shape_cast %51 : vector<1x1x64x64xbf16> to vector<64x64xbf16>
    %c0_56 = arith.constant 0 : index
    %c0_57 = arith.constant 0 : index
    %c0_58 = arith.constant 0 : index
    %53 = vector.load %arg7[%c0_56, %c0_57, %c0_58] : memref<1x1x64xf32, #tpu.memory_space<vmem>>, vector<1x1x64xf32>
    %54 = vector.shape_cast %53 : vector<1x1x64xf32> to vector<1x64xf32>
    %55 = vector.shape_cast %54 : vector<1x64xf32> to vector<1x64xf32>
    %56 = vector.broadcast %55 : vector<1x64xf32> to vector<8x64xf32>
    %cst_59 = arith.constant 0.000000e+00 : f32
    %57 = vector.broadcast %cst_59 : f32 to vector<8x64xf32>
    %c0_60 = arith.constant 0 : index
    %c0_61 = arith.constant 0 : index
    %58 = vector.load %arg9[%c0_60, %c0_61] : memref<64x64xf32, #tpu.memory_space<vmem>>, vector<8x64xf32>
    %c0_62 = arith.constant 0 : index
    %c0_63 = arith.constant 0 : index
    %59 = vector.load %arg10[%c0_62, %c0_63] : memref<64x64xf32, #tpu.memory_space<vmem>>, vector<8x64xf32>
    %c0_64 = arith.constant 0 : index
    %c0_65 = arith.constant 0 : index
    %60 = vector.load %arg11[%c0_64, %c0_65] : memref<64x64xf32, #tpu.memory_space<vmem>>, vector<8x64xf32>
    %61 = arith.truncf %57 : vector<8x64xf32> to vector<8x64xbf16>
    %cst_66 = arith.constant dense<0.000000e+00> : vector<8x64xf32>
    %62 = tpu.matmul %61, %48, %cst_66 {dimension_numbers = #tpu.dot_dimension_numbers<[1], [0], [0], [1], [0, 0, 1, 1], [], []>} : vector<8x64xbf16>, vector<64x64xbf16>, vector<8x64xf32> -> vector<8x64xf32>
    %cst_67 = arith.constant dense<0.000000e+00> : vector<8x64xf32>
    %63 = tpu.matmul %61, %50, %cst_67 {dimension_numbers = #tpu.dot_dimension_numbers<[1], [0], [0], [1], [0, 0, 1, 1], [], []>} : vector<8x64xbf16>, vector<64x64xbf16>, vector<8x64xf32> -> vector<8x64xf32>
    %cst_68 = arith.constant dense<0.000000e+00> : vector<8x64xf32>
    %64 = tpu.matmul %61, %52, %cst_68 {dimension_numbers = #tpu.dot_dimension_numbers<[1], [0], [0], [1], [0, 0, 1, 1], [], []>} : vector<8x64xbf16>, vector<64x64xbf16>, vector<8x64xf32> -> vector<8x64xf32>
    %65 = arith.addf %64, %56 : vector<8x64xf32>
    %66 = arith.addf %58, %62 : vector<8x64xf32>
    %67 = arith.negf %66 : vector<8x64xf32>
    %68 = math.exp %67 : vector<8x64xf32>
    %cst_69 = arith.constant 1.000000e+00 : f32
    %69 = vector.broadcast %cst_69 : f32 to vector<8x64xf32>
    %70 = arith.addf %69, %68 : vector<8x64xf32>
    %71 = arith.divf %69, %70 : vector<8x64xf32>
    %72 = arith.addf %59, %63 : vector<8x64xf32>
    %73 = arith.negf %72 : vector<8x64xf32>
    %74 = math.exp %73 : vector<8x64xf32>
    %cst_70 = arith.constant 1.000000e+00 : f32
    %75 = vector.broadcast %cst_70 : f32 to vector<8x64xf32>
    %76 = arith.addf %75, %74 : vector<8x64xf32>
    %77 = arith.divf %75, %76 : vector<8x64xf32>
    %78 = arith.mulf %71, %65 : vector<8x64xf32>
    %79 = arith.addf %60, %78 : vector<8x64xf32>
    %80 = math.tanh %79 : vector<8x64xf32>
    %81 = arith.subf %57, %80 : vector<8x64xf32>
    %82 = arith.mulf %77, %81 : vector<8x64xf32>
    %83 = arith.addf %80, %82 : vector<8x64xf32>
    %c8 = arith.constant 8 : index
    %c0_71 = arith.constant 0 : index
    %84 = vector.load %arg9[%c8, %c0_71] : memref<64x64xf32, #tpu.memory_space<vmem>>, vector<8x64xf32>
    %c8_72 = arith.constant 8 : index
    %c0_73 = arith.constant 0 : index
    %85 = vector.load %arg10[%c8_72, %c0_73] : memref<64x64xf32, #tpu.memory_space<vmem>>, vector<8x64xf32>
    %c8_74 = arith.constant 8 : index
    %c0_75 = arith.constant 0 : index
    %86 = vector.load %arg11[%c8_74, %c0_75] : memref<64x64xf32, #tpu.memory_space<vmem>>, vector<8x64xf32>
    %87 = arith.truncf %83 : vector<8x64xf32> to vector<8x64xbf16>
    %cst_76 = arith.constant dense<0.000000e+00> : vector<8x64xf32>
    %88 = tpu.matmul %87, %48, %cst_76 {dimension_numbers = #tpu.dot_dimension_numbers<[1], [0], [0], [1], [0, 0, 1, 1], [], []>} : vector<8x64xbf16>, vector<64x64xbf16>, vector<8x64xf32> -> vector<8x64xf32>
    %cst_77 = arith.constant dense<0.000000e+00> : vector<8x64xf32>
    %89 = tpu.matmul %87, %50, %cst_77 {dimension_numbers = #tpu.dot_dimension_numbers<[1], [0], [0], [1], [0, 0, 1, 1], [], []>} : vector<8x64xbf16>, vector<64x64xbf16>, vector<8x64xf32> -> vector<8x64xf32>
    %cst_78 = arith.constant dense<0.000000e+00> : vector<8x64xf32>
    %90 = tpu.matmul %87, %52, %cst_78 {dimension_numbers = #tpu.dot_dimension_numbers<[1], [0], [0], [1], [0, 0, 1, 1], [], []>} : vector<8x64xbf16>, vector<64x64xbf16>, vector<8x64xf32> -> vector<8x64xf32>
    %91 = arith.addf %90, %56 : vector<8x64xf32>
    %92 = arith.addf %84, %88 : vector<8x64xf32>
    %93 = arith.negf %92 : vector<8x64xf32>
    %94 = math.exp %93 : vector<8x64xf32>
    %cst_79 = arith.constant 1.000000e+00 : f32
    %95 = vector.broadcast %cst_79 : f32 to vector<8x64xf32>
    %96 = arith.addf %95, %94 : vector<8x64xf32>
    %97 = arith.divf %95, %96 : vector<8x64xf32>
    %98 = arith.addf %85, %89 : vector<8x64xf32>
    %99 = arith.negf %98 : vector<8x64xf32>
    %100 = math.exp %99 : vector<8x64xf32>
    %cst_80 = arith.constant 1.000000e+00 : f32
    %101 = vector.broadcast %cst_80 : f32 to vector<8x64xf32>
    %102 = arith.addf %101, %100 : vector<8x64xf32>
    %103 = arith.divf %101, %102 : vector<8x64xf32>
    %104 = arith.mulf %97, %91 : vector<8x64xf32>
    %105 = arith.addf %86, %104 : vector<8x64xf32>
    %106 = math.tanh %105 : vector<8x64xf32>
    %107 = arith.subf %83, %106 : vector<8x64xf32>
    %108 = arith.mulf %103, %107 : vector<8x64xf32>
    %109 = arith.addf %106, %108 : vector<8x64xf32>
    %c16 = arith.constant 16 : index
    %c0_81 = arith.constant 0 : index
    %110 = vector.load %arg9[%c16, %c0_81] : memref<64x64xf32, #tpu.memory_space<vmem>>, vector<8x64xf32>
    %c16_82 = arith.constant 16 : index
    %c0_83 = arith.constant 0 : index
    %111 = vector.load %arg10[%c16_82, %c0_83] : memref<64x64xf32, #tpu.memory_space<vmem>>, vector<8x64xf32>
    %c16_84 = arith.constant 16 : index
    %c0_85 = arith.constant 0 : index
    %112 = vector.load %arg11[%c16_84, %c0_85] : memref<64x64xf32, #tpu.memory_space<vmem>>, vector<8x64xf32>
    %113 = arith.truncf %109 : vector<8x64xf32> to vector<8x64xbf16>
    %cst_86 = arith.constant dense<0.000000e+00> : vector<8x64xf32>
    %114 = tpu.matmul %113, %48, %cst_86 {dimension_numbers = #tpu.dot_dimension_numbers<[1], [0], [0], [1], [0, 0, 1, 1], [], []>} : vector<8x64xbf16>, vector<64x64xbf16>, vector<8x64xf32> -> vector<8x64xf32>
    %cst_87 = arith.constant dense<0.000000e+00> : vector<8x64xf32>
    %115 = tpu.matmul %113, %50, %cst_87 {dimension_numbers = #tpu.dot_dimension_numbers<[1], [0], [0], [1], [0, 0, 1, 1], [], []>} : vector<8x64xbf16>, vector<64x64xbf16>, vector<8x64xf32> -> vector<8x64xf32>
    %cst_88 = arith.constant dense<0.000000e+00> : vector<8x64xf32>
    %116 = tpu.matmul %113, %52, %cst_88 {dimension_numbers = #tpu.dot_dimension_numbers<[1], [0], [0], [1], [0, 0, 1, 1], [], []>} : vector<8x64xbf16>, vector<64x64xbf16>, vector<8x64xf32> -> vector<8x64xf32>
    %117 = arith.addf %116, %56 : vector<8x64xf32>
    %118 = arith.addf %110, %114 : vector<8x64xf32>
    %119 = arith.negf %118 : vector<8x64xf32>
    %120 = math.exp %119 : vector<8x64xf32>
    %cst_89 = arith.constant 1.000000e+00 : f32
    %121 = vector.broadcast %cst_89 : f32 to vector<8x64xf32>
    %122 = arith.addf %121, %120 : vector<8x64xf32>
    %123 = arith.divf %121, %122 : vector<8x64xf32>
    %124 = arith.addf %111, %115 : vector<8x64xf32>
    %125 = arith.negf %124 : vector<8x64xf32>
    %126 = math.exp %125 : vector<8x64xf32>
    %cst_90 = arith.constant 1.000000e+00 : f32
    %127 = vector.broadcast %cst_90 : f32 to vector<8x64xf32>
    %128 = arith.addf %127, %126 : vector<8x64xf32>
    %129 = arith.divf %127, %128 : vector<8x64xf32>
    %130 = arith.mulf %123, %117 : vector<8x64xf32>
    %131 = arith.addf %112, %130 : vector<8x64xf32>
    %132 = math.tanh %131 : vector<8x64xf32>
    %133 = arith.subf %109, %132 : vector<8x64xf32>
    %134 = arith.mulf %129, %133 : vector<8x64xf32>
    %135 = arith.addf %132, %134 : vector<8x64xf32>
    %c24 = arith.constant 24 : index
    %c0_91 = arith.constant 0 : index
    %136 = vector.load %arg9[%c24, %c0_91] : memref<64x64xf32, #tpu.memory_space<vmem>>, vector<8x64xf32>
    %c24_92 = arith.constant 24 : index
    %c0_93 = arith.constant 0 : index
    %137 = vector.load %arg10[%c24_92, %c0_93] : memref<64x64xf32, #tpu.memory_space<vmem>>, vector<8x64xf32>
    %c24_94 = arith.constant 24 : index
    %c0_95 = arith.constant 0 : index
    %138 = vector.load %arg11[%c24_94, %c0_95] : memref<64x64xf32, #tpu.memory_space<vmem>>, vector<8x64xf32>
    %139 = arith.truncf %135 : vector<8x64xf32> to vector<8x64xbf16>
    %cst_96 = arith.constant dense<0.000000e+00> : vector<8x64xf32>
    %140 = tpu.matmul %139, %48, %cst_96 {dimension_numbers = #tpu.dot_dimension_numbers<[1], [0], [0], [1], [0, 0, 1, 1], [], []>} : vector<8x64xbf16>, vector<64x64xbf16>, vector<8x64xf32> -> vector<8x64xf32>
    %cst_97 = arith.constant dense<0.000000e+00> : vector<8x64xf32>
    %141 = tpu.matmul %139, %50, %cst_97 {dimension_numbers = #tpu.dot_dimension_numbers<[1], [0], [0], [1], [0, 0, 1, 1], [], []>} : vector<8x64xbf16>, vector<64x64xbf16>, vector<8x64xf32> -> vector<8x64xf32>
    %cst_98 = arith.constant dense<0.000000e+00> : vector<8x64xf32>
    %142 = tpu.matmul %139, %52, %cst_98 {dimension_numbers = #tpu.dot_dimension_numbers<[1], [0], [0], [1], [0, 0, 1, 1], [], []>} : vector<8x64xbf16>, vector<64x64xbf16>, vector<8x64xf32> -> vector<8x64xf32>
    %143 = arith.addf %142, %56 : vector<8x64xf32>
    %144 = arith.addf %136, %140 : vector<8x64xf32>
    %145 = arith.negf %144 : vector<8x64xf32>
    %146 = math.exp %145 : vector<8x64xf32>
    %cst_99 = arith.constant 1.000000e+00 : f32
    %147 = vector.broadcast %cst_99 : f32 to vector<8x64xf32>
    %148 = arith.addf %147, %146 : vector<8x64xf32>
    %149 = arith.divf %147, %148 : vector<8x64xf32>
    %150 = arith.addf %137, %141 : vector<8x64xf32>
    %151 = arith.negf %150 : vector<8x64xf32>
    %152 = math.exp %151 : vector<8x64xf32>
    %cst_100 = arith.constant 1.000000e+00 : f32
    %153 = vector.broadcast %cst_100 : f32 to vector<8x64xf32>
    %154 = arith.addf %153, %152 : vector<8x64xf32>
    %155 = arith.divf %153, %154 : vector<8x64xf32>
    %156 = arith.mulf %149, %143 : vector<8x64xf32>
    %157 = arith.addf %138, %156 : vector<8x64xf32>
    %158 = math.tanh %157 : vector<8x64xf32>
    %159 = arith.subf %135, %158 : vector<8x64xf32>
    %160 = arith.mulf %155, %159 : vector<8x64xf32>
    %161 = arith.addf %158, %160 : vector<8x64xf32>
    %c32 = arith.constant 32 : index
    %c0_101 = arith.constant 0 : index
    %162 = vector.load %arg9[%c32, %c0_101] : memref<64x64xf32, #tpu.memory_space<vmem>>, vector<8x64xf32>
    %c32_102 = arith.constant 32 : index
    %c0_103 = arith.constant 0 : index
    %163 = vector.load %arg10[%c32_102, %c0_103] : memref<64x64xf32, #tpu.memory_space<vmem>>, vector<8x64xf32>
    %c32_104 = arith.constant 32 : index
    %c0_105 = arith.constant 0 : index
    %164 = vector.load %arg11[%c32_104, %c0_105] : memref<64x64xf32, #tpu.memory_space<vmem>>, vector<8x64xf32>
    %165 = arith.truncf %161 : vector<8x64xf32> to vector<8x64xbf16>
    %cst_106 = arith.constant dense<0.000000e+00> : vector<8x64xf32>
    %166 = tpu.matmul %165, %48, %cst_106 {dimension_numbers = #tpu.dot_dimension_numbers<[1], [0], [0], [1], [0, 0, 1, 1], [], []>} : vector<8x64xbf16>, vector<64x64xbf16>, vector<8x64xf32> -> vector<8x64xf32>
    %cst_107 = arith.constant dense<0.000000e+00> : vector<8x64xf32>
    %167 = tpu.matmul %165, %50, %cst_107 {dimension_numbers = #tpu.dot_dimension_numbers<[1], [0], [0], [1], [0, 0, 1, 1], [], []>} : vector<8x64xbf16>, vector<64x64xbf16>, vector<8x64xf32> -> vector<8x64xf32>
    %cst_108 = arith.constant dense<0.000000e+00> : vector<8x64xf32>
    %168 = tpu.matmul %165, %52, %cst_108 {dimension_numbers = #tpu.dot_dimension_numbers<[1], [0], [0], [1], [0, 0, 1, 1], [], []>} : vector<8x64xbf16>, vector<64x64xbf16>, vector<8x64xf32> -> vector<8x64xf32>
    %169 = arith.addf %168, %56 : vector<8x64xf32>
    %170 = arith.addf %162, %166 : vector<8x64xf32>
    %171 = arith.negf %170 : vector<8x64xf32>
    %172 = math.exp %171 : vector<8x64xf32>
    %cst_109 = arith.constant 1.000000e+00 : f32
    %173 = vector.broadcast %cst_109 : f32 to vector<8x64xf32>
    %174 = arith.addf %173, %172 : vector<8x64xf32>
    %175 = arith.divf %173, %174 : vector<8x64xf32>
    %176 = arith.addf %163, %167 : vector<8x64xf32>
    %177 = arith.negf %176 : vector<8x64xf32>
    %178 = math.exp %177 : vector<8x64xf32>
    %cst_110 = arith.constant 1.000000e+00 : f32
    %179 = vector.broadcast %cst_110 : f32 to vector<8x64xf32>
    %180 = arith.addf %179, %178 : vector<8x64xf32>
    %181 = arith.divf %179, %180 : vector<8x64xf32>
    %182 = arith.mulf %175, %169 : vector<8x64xf32>
    %183 = arith.addf %164, %182 : vector<8x64xf32>
    %184 = math.tanh %183 : vector<8x64xf32>
    %185 = arith.subf %161, %184 : vector<8x64xf32>
    %186 = arith.mulf %181, %185 : vector<8x64xf32>
    %187 = arith.addf %184, %186 : vector<8x64xf32>
    %c40 = arith.constant 40 : index
    %c0_111 = arith.constant 0 : index
    %188 = vector.load %arg9[%c40, %c0_111] : memref<64x64xf32, #tpu.memory_space<vmem>>, vector<8x64xf32>
    %c40_112 = arith.constant 40 : index
    %c0_113 = arith.constant 0 : index
    %189 = vector.load %arg10[%c40_112, %c0_113] : memref<64x64xf32, #tpu.memory_space<vmem>>, vector<8x64xf32>
    %c40_114 = arith.constant 40 : index
    %c0_115 = arith.constant 0 : index
    %190 = vector.load %arg11[%c40_114, %c0_115] : memref<64x64xf32, #tpu.memory_space<vmem>>, vector<8x64xf32>
    %191 = arith.truncf %187 : vector<8x64xf32> to vector<8x64xbf16>
    %cst_116 = arith.constant dense<0.000000e+00> : vector<8x64xf32>
    %192 = tpu.matmul %191, %48, %cst_116 {dimension_numbers = #tpu.dot_dimension_numbers<[1], [0], [0], [1], [0, 0, 1, 1], [], []>} : vector<8x64xbf16>, vector<64x64xbf16>, vector<8x64xf32> -> vector<8x64xf32>
    %cst_117 = arith.constant dense<0.000000e+00> : vector<8x64xf32>
    %193 = tpu.matmul %191, %50, %cst_117 {dimension_numbers = #tpu.dot_dimension_numbers<[1], [0], [0], [1], [0, 0, 1, 1], [], []>} : vector<8x64xbf16>, vector<64x64xbf16>, vector<8x64xf32> -> vector<8x64xf32>
    %cst_118 = arith.constant dense<0.000000e+00> : vector<8x64xf32>
    %194 = tpu.matmul %191, %52, %cst_118 {dimension_numbers = #tpu.dot_dimension_numbers<[1], [0], [0], [1], [0, 0, 1, 1], [], []>} : vector<8x64xbf16>, vector<64x64xbf16>, vector<8x64xf32> -> vector<8x64xf32>
    %195 = arith.addf %194, %56 : vector<8x64xf32>
    %196 = arith.addf %188, %192 : vector<8x64xf32>
    %197 = arith.negf %196 : vector<8x64xf32>
    %198 = math.exp %197 : vector<8x64xf32>
    %cst_119 = arith.constant 1.000000e+00 : f32
    %199 = vector.broadcast %cst_119 : f32 to vector<8x64xf32>
    %200 = arith.addf %199, %198 : vector<8x64xf32>
    %201 = arith.divf %199, %200 : vector<8x64xf32>
    %202 = arith.addf %189, %193 : vector<8x64xf32>
    %203 = arith.negf %202 : vector<8x64xf32>
    %204 = math.exp %203 : vector<8x64xf32>
    %cst_120 = arith.constant 1.000000e+00 : f32
    %205 = vector.broadcast %cst_120 : f32 to vector<8x64xf32>
    %206 = arith.addf %205, %204 : vector<8x64xf32>
    %207 = arith.divf %205, %206 : vector<8x64xf32>
    %208 = arith.mulf %201, %195 : vector<8x64xf32>
    %209 = arith.addf %190, %208 : vector<8x64xf32>
    %210 = math.tanh %209 : vector<8x64xf32>
    %211 = arith.subf %187, %210 : vector<8x64xf32>
    %212 = arith.mulf %207, %211 : vector<8x64xf32>
    %213 = arith.addf %210, %212 : vector<8x64xf32>
    %c48 = arith.constant 48 : index
    %c0_121 = arith.constant 0 : index
    %214 = vector.load %arg9[%c48, %c0_121] : memref<64x64xf32, #tpu.memory_space<vmem>>, vector<8x64xf32>
    %c48_122 = arith.constant 48 : index
    %c0_123 = arith.constant 0 : index
    %215 = vector.load %arg10[%c48_122, %c0_123] : memref<64x64xf32, #tpu.memory_space<vmem>>, vector<8x64xf32>
    %c48_124 = arith.constant 48 : index
    %c0_125 = arith.constant 0 : index
    %216 = vector.load %arg11[%c48_124, %c0_125] : memref<64x64xf32, #tpu.memory_space<vmem>>, vector<8x64xf32>
    %217 = arith.truncf %213 : vector<8x64xf32> to vector<8x64xbf16>
    %cst_126 = arith.constant dense<0.000000e+00> : vector<8x64xf32>
    %218 = tpu.matmul %217, %48, %cst_126 {dimension_numbers = #tpu.dot_dimension_numbers<[1], [0], [0], [1], [0, 0, 1, 1], [], []>} : vector<8x64xbf16>, vector<64x64xbf16>, vector<8x64xf32> -> vector<8x64xf32>
    %cst_127 = arith.constant dense<0.000000e+00> : vector<8x64xf32>
    %219 = tpu.matmul %217, %50, %cst_127 {dimension_numbers = #tpu.dot_dimension_numbers<[1], [0], [0], [1], [0, 0, 1, 1], [], []>} : vector<8x64xbf16>, vector<64x64xbf16>, vector<8x64xf32> -> vector<8x64xf32>
    %cst_128 = arith.constant dense<0.000000e+00> : vector<8x64xf32>
    %220 = tpu.matmul %217, %52, %cst_128 {dimension_numbers = #tpu.dot_dimension_numbers<[1], [0], [0], [1], [0, 0, 1, 1], [], []>} : vector<8x64xbf16>, vector<64x64xbf16>, vector<8x64xf32> -> vector<8x64xf32>
    %221 = arith.addf %220, %56 : vector<8x64xf32>
    %222 = arith.addf %214, %218 : vector<8x64xf32>
    %223 = arith.negf %222 : vector<8x64xf32>
    %224 = math.exp %223 : vector<8x64xf32>
    %cst_129 = arith.constant 1.000000e+00 : f32
    %225 = vector.broadcast %cst_129 : f32 to vector<8x64xf32>
    %226 = arith.addf %225, %224 : vector<8x64xf32>
    %227 = arith.divf %225, %226 : vector<8x64xf32>
    %228 = arith.addf %215, %219 : vector<8x64xf32>
    %229 = arith.negf %228 : vector<8x64xf32>
    %230 = math.exp %229 : vector<8x64xf32>
    %cst_130 = arith.constant 1.000000e+00 : f32
    %231 = vector.broadcast %cst_130 : f32 to vector<8x64xf32>
    %232 = arith.addf %231, %230 : vector<8x64xf32>
    %233 = arith.divf %231, %232 : vector<8x64xf32>
    %234 = arith.mulf %227, %221 : vector<8x64xf32>
    %235 = arith.addf %216, %234 : vector<8x64xf32>
    %236 = math.tanh %235 : vector<8x64xf32>
    %237 = arith.subf %213, %236 : vector<8x64xf32>
    %238 = arith.mulf %233, %237 : vector<8x64xf32>
    %239 = arith.addf %236, %238 : vector<8x64xf32>
    %c56 = arith.constant 56 : index
    %c0_131 = arith.constant 0 : index
    %240 = vector.load %arg9[%c56, %c0_131] : memref<64x64xf32, #tpu.memory_space<vmem>>, vector<8x64xf32>
    %c56_132 = arith.constant 56 : index
    %c0_133 = arith.constant 0 : index
    %241 = vector.load %arg10[%c56_132, %c0_133] : memref<64x64xf32, #tpu.memory_space<vmem>>, vector<8x64xf32>
    %c56_134 = arith.constant 56 : index
    %c0_135 = arith.constant 0 : index
    %242 = vector.load %arg11[%c56_134, %c0_135] : memref<64x64xf32, #tpu.memory_space<vmem>>, vector<8x64xf32>
    %243 = arith.truncf %239 : vector<8x64xf32> to vector<8x64xbf16>
    %cst_136 = arith.constant dense<0.000000e+00> : vector<8x64xf32>
    %244 = tpu.matmul %243, %48, %cst_136 {dimension_numbers = #tpu.dot_dimension_numbers<[1], [0], [0], [1], [0, 0, 1, 1], [], []>} : vector<8x64xbf16>, vector<64x64xbf16>, vector<8x64xf32> -> vector<8x64xf32>
    %cst_137 = arith.constant dense<0.000000e+00> : vector<8x64xf32>
    %245 = tpu.matmul %243, %50, %cst_137 {dimension_numbers = #tpu.dot_dimension_numbers<[1], [0], [0], [1], [0, 0, 1, 1], [], []>} : vector<8x64xbf16>, vector<64x64xbf16>, vector<8x64xf32> -> vector<8x64xf32>
    %cst_138 = arith.constant dense<0.000000e+00> : vector<8x64xf32>
    %246 = tpu.matmul %243, %52, %cst_138 {dimension_numbers = #tpu.dot_dimension_numbers<[1], [0], [0], [1], [0, 0, 1, 1], [], []>} : vector<8x64xbf16>, vector<64x64xbf16>, vector<8x64xf32> -> vector<8x64xf32>
    %247 = arith.addf %246, %56 : vector<8x64xf32>
    %248 = arith.addf %240, %244 : vector<8x64xf32>
    %249 = arith.negf %248 : vector<8x64xf32>
    %250 = math.exp %249 : vector<8x64xf32>
    %cst_139 = arith.constant 1.000000e+00 : f32
    %251 = vector.broadcast %cst_139 : f32 to vector<8x64xf32>
    %252 = arith.addf %251, %250 : vector<8x64xf32>
    %253 = arith.divf %251, %252 : vector<8x64xf32>
    %254 = arith.addf %241, %245 : vector<8x64xf32>
    %255 = arith.negf %254 : vector<8x64xf32>
    %256 = math.exp %255 : vector<8x64xf32>
    %cst_140 = arith.constant 1.000000e+00 : f32
    %257 = vector.broadcast %cst_140 : f32 to vector<8x64xf32>
    %258 = arith.addf %257, %256 : vector<8x64xf32>
    %259 = arith.divf %257, %258 : vector<8x64xf32>
    %260 = arith.mulf %253, %247 : vector<8x64xf32>
    %261 = arith.addf %242, %260 : vector<8x64xf32>
    %262 = math.tanh %261 : vector<8x64xf32>
    %263 = arith.subf %239, %262 : vector<8x64xf32>
    %264 = arith.mulf %259, %263 : vector<8x64xf32>
    %265 = arith.addf %262, %264 : vector<8x64xf32>
    %cst_141 = arith.constant 0.000000e+00 : f32
    %266 = vector.broadcast %cst_141 : f32 to vector<8x64xf32>
    %267 = tpu.concatenate %265, %266 in 1 : vector<8x64xf32>, vector<8x64xf32> -> vector<8x128xf32>
    %c0_142 = arith.constant 0 : index
    %c0_143 = arith.constant 0 : index
    %c0_144 = arith.constant 0 : index
    %268 = vector.load %arg8[%c0_142, %c0_143, %c0_144] : memref<1x8x128xf32, #tpu.memory_space<vmem>>, vector<1x8x128xf32>
    %269 = vector.shape_cast %268 : vector<1x8x128xf32> to vector<8x128xf32>
    %270 = vector.shape_cast %267 : vector<8x128xf32> to vector<1x8x128xf32>
    tpu.vector_store %arg8[%c0_142, %c0_143, %c0_144], %270 {strides = array<i32>} : memref<1x8x128xf32, #tpu.memory_space<vmem>>, vector<1x8x128xf32>,
    return
  }
  func.func @transform_0(%arg0: i32) -> (i32, i32, i32) {
    %c0_i32 = arith.constant 0 : i32
    %c0_i32_0 = arith.constant 0 : i32
    %c0_i32_1 = arith.constant 0 : i32
    return %arg0, %c0_i32, %c0_i32_0 : i32, i32, i32
  }
  func.func @transform_1(%arg0: i32) -> (i32, i32, i32) {
    %c0_i32 = arith.constant 0 : i32
    %c0_i32_0 = arith.constant 0 : i32
    %c0_i32_1 = arith.constant 0 : i32
    return %arg0, %c0_i32, %c0_i32_0 : i32, i32, i32
  }
  func.func @transform_2(%arg0: i32) -> (i32, i32, i32) {
    %c0_i32 = arith.constant 0 : i32
    %c0_i32_0 = arith.constant 0 : i32
    %c0_i32_1 = arith.constant 0 : i32
    return %arg0, %c0_i32, %c0_i32_0 : i32, i32, i32
  }
  func.func @transform_3(%arg0: i32) -> (i32, i32, i32, i32) {
    %c0_i32 = arith.constant 0 : i32
    %c0_i32_0 = arith.constant 0 : i32
    %c0_i32_1 = arith.constant 0 : i32
    %c0_i32_2 = arith.constant 0 : i32
    return %arg0, %c0_i32, %c0_i32_0, %c0_i32_1 : i32, i32, i32, i32
  }
  func.func @transform_4(%arg0: i32) -> (i32, i32, i32, i32) {
    %c0_i32 = arith.constant 0 : i32
    %c0_i32_0 = arith.constant 0 : i32
    %c0_i32_1 = arith.constant 0 : i32
    %c0_i32_2 = arith.constant 0 : i32
    return %arg0, %c0_i32, %c0_i32_0, %c0_i32_1 : i32, i32, i32, i32
  }
  func.func @transform_5(%arg0: i32) -> (i32, i32, i32, i32) {
    %c0_i32 = arith.constant 0 : i32
    %c0_i32_0 = arith.constant 0 : i32
    %c0_i32_1 = arith.constant 0 : i32
    %c0_i32_2 = arith.constant 0 : i32
    return %arg0, %c0_i32, %c0_i32_0, %c0_i32_1 : i32, i32, i32, i32
  }
  func.func @transform_6(%arg0: i32) -> (i32, i32, i32) {
    %c0_i32 = arith.constant 0 : i32
    %c0_i32_0 = arith.constant 0 : i32
    %c0_i32_1 = arith.constant 0 : i32
    return %arg0, %c0_i32, %c0_i32_0 : i32, i32, i32
  }
  func.func @transform_7(%arg0: i32) -> (i32, i32, i32) {
    %c0_i32 = arith.constant 0 : i32
    %c0_i32_0 = arith.constant 0 : i32
    %c0_i32_1 = arith.constant 0 : i32
    return %arg0, %c0_i32, %c0_i32_0 : i32, i32, i32
  }
}

</mosaic_0001>

<llo_original>
// kernel: tpu_custom_call.1
$region0: #{tpu_custom_call.1}
  #allocation0 [shape = 'u32[]', space=smem, size = 0x4, offset = 0x4, fixed_abs, tag = 'smem constant byte address 0x4 - core index']
  #allocation1 [shape = 'u32[72,128]{1,0:T(1,128)}', space=vmem, size = 0x9000, scoped, tag = 'internal scratch']
  #allocation2 [shape = 'f32[64,64]{1,0:T(8,128)}', space=vmem, size = 0x8000, scoped, tag = 'scratch operand']
  #allocation3 [shape = 'f32[64,64]{1,0:T(8,128)}', space=vmem, size = 0x8000, scoped, tag = 'scratch operand']
  #allocation4 [shape = 'f32[64,64]{1,0:T(8,128)}', space=vmem, size = 0x8000, scoped, tag = 'scratch operand']
  %s0 = inlined_call_operand.vmem [shape: s32[2,64,1], index: 0, kind: input, shape index: {}]
  %s1 = inlined_call_operand.vmem [shape: s32[2,64,1], index: 1, kind: input, shape index: {}]
  %s2 = inlined_call_operand.vmem [shape: bf16[2,50,32], index: 2, kind: input, shape index: {}]
  %s3 = inlined_call_operand.vmem [shape: bf16[2,3,64,64], index: 3, kind: input, shape index: {}]
  %s4 = inlined_call_operand.vmem [shape: f32[2,3,1,64], index: 4, kind: input, shape index: {}]
  %s5 = inlined_call_operand.hbm [shape: bf16[2,3,64,64], index: 5, kind: input, shape index: {}]
  %s6 = inlined_call_operand.vmem [shape: f32[2,1,64], index: 6, kind: input, shape index: {}]
  %s7 = inlined_call_operand.hbm [shape: f32[2,8,128], index: 7, kind: output, shape index: {}]
  %s8 = sld [smem:[#allocation0]]
  $region65: #{tpu_custom_call.1} parent=0
    _
  %s10 = ssub.s32 1, %s8
  %s11 = scalar_select 0, %s10, %s8
  $region1: #{tpu_custom_call.1} parent=0
    #allocation5 [shape = 'u8[98304]{0}', space=vmem, size = 0x18000, scoped, tag = 'input window, operand 5']
    #allocation6 [shape = 's32[2]{0}', space=sflag, size = 0x8, scoped, tag = 'scoped memory for tpu_custom_call.1']
    #allocation7 [shape = 's32[2]{0}', space=sflag, size = 0x8, scoped, tag = 'scoped memory for tpu_custom_call.1']
    #allocation8 [shape = 'u8[8192]{0}', space=vmem, size = 0x2000, scoped, tag = 'output window, operand 0']
    %12 = vsyncpa [#allocation6], 0
    %s13 = scalar_lea.sflag [#allocation6], 1
    %14 = vsyncpa %s13, 0
    %15 = vsyncpa [#allocation7], 0
    %s16 = scalar_lea.sflag [#allocation7], 1
    %17 = vsyncpa %s16, 0
    loop: start=0, step=1, limit=4
    $region2: #{tpu_custom_call.1} parent=1 // loop_pre_header
      _
    $region3: #{tpu_custom_call.1} parent=1 // loop_header
      %s19 = sphi 0, %s23
      %p20 = scmp.ge.s32.totalorder %s19, 4
      %s29 = sphi 0, %s31
      %s32 = sphi 0, %s29
      %s33 = sphi 0, %s32
      %s49 = sphi 0, %s33
      %s55 = sphi 0, %s57
      %s58 = sphi 0, %s55
      %s59 = sphi 0, %s58
      %s75 = sphi 0, %s59
      %s81 = sphi 0, %s83
      %s84 = sphi 0, %s81
      %s85 = sphi 0, %s84
      %s101 = sphi 0, %s85
      %s107 = sphi 0, %s109
      %s110 = sphi 0, %s107
      %s111 = sphi 0, %s110
      %s127 = sphi 0, %s111
      %s133 = sphi 0, %s135
      %s136 = sphi 0, %s133
      %s137 = sphi 0, %s136
      %s153 = sphi 0, %s137
      %s159 = sphi 0, %s161
      %s162 = sphi 0, %s159
      %s163 = sphi 0, %s162
      %s179 = sphi 0, %s163
      %s185 = sphi 0, %s187
      %s188 = sphi 0, %s185
      %s189 = sphi 0, %s188
      %s205 = sphi 0, %s189
      %s211 = sphi 0, %s213
      %s214 = sphi 0, %s211
      %s215 = sphi 0, %s214
      %s231 = sphi 0, %s215
    $region4: #{tpu_custom_call.1} parent=1 // loop_header_branch
      %22 = sbr.rel (%p20) target = $region8
    $region5: #{tpu_custom_call.1} parent=1 // loop_body
      %s24 = ssub.s32 %s19, 1
      %s25 = ssub.s32 %s19, 2
      %s26 = sadd.s32 %s19, 1
      %s27 = ssub.s32 %s19, %s26
      %p28 = scmp.eq.s32.totalorder %s27, 0
      %s30 = sadd.s32 %s29, 1
      %s31 = scalar_select %p28, %s29, %s30
      %p34 = pneg %p28
      %p35 = scmp.eq.s32.totalorder %s19, 1
      %p36 = por %p34, %p35
      %p37 = scmp.ne.s32.totalorder %s29, %s32
      %p38 = scmp.eq.s32.totalorder %s19, 0
      %p39 = por %p37, %p38
      %p40 = scmp.ne.s32.totalorder %s29, %s32
      %p41 = scmp.eq.s32.totalorder %s24, 1
      %p42 = por %p40, %p41
      %p43 = scmp.ne.s32.totalorder %s32, %s33
      %p44 = scmp.eq.s32.totalorder %s24, 0
      %p45 = por %p43, %p44
      %p46 = scmp.ne.s32.totalorder %s32, %s33
      %p47 = scmp.eq.s32.totalorder %s25, 1
      %p48 = por %p46, %p47
      %p50 = scmp.ne.s32.totalorder %s33, %s49
      %p51 = scmp.eq.s32.totalorder %s25, 0
      %p52 = por %p50, %p51
      %s53 = ssub.s32 %s19, %s26
      %p54 = scmp.eq.s32.totalorder %s53, 0
      %s56 = sadd.s32 %s55, 1
      %s57 = scalar_select %p54, %s55, %s56
      %p60 = pneg %p54
      %p61 = scmp.eq.s32.totalorder %s19, 1
      %p62 = por %p60, %p61
      %p63 = scmp.ne.s32.totalorder %s55, %s58
      %p64 = scmp.eq.s32.totalorder %s19, 0
      %p65 = por %p63, %p64
      %p66 = scmp.ne.s32.totalorder %s55, %s58
      %p67 = scmp.eq.s32.totalorder %s24, 1
      %p68 = por %p66, %p67
      %p69 = scmp.ne.s32.totalorder %s58, %s59
      %p70 = scmp.eq.s32.totalorder %s24, 0
      %p71 = por %p69, %p70
      %p72 = scmp.ne.s32.totalorder %s58, %s59
      %p73 = scmp.eq.s32.totalorder %s25, 1
      %p74 = por %p72, %p73
      %p76 = scmp.ne.s32.totalorder %s59, %s75
      %p77 = scmp.eq.s32.totalorder %s25, 0
      %p78 = por %p76, %p77
      %s79 = ssub.s32 %s19, %s26
      %p80 = scmp.eq.s32.totalorder %s79, 0
      %s82 = sadd.s32 %s81, 1
      %s83 = scalar_select %p80, %s81, %s82
      %p86 = pneg %p80
      %p87 = scmp.eq.s32.totalorder %s19, 1
      %p88 = por %p86, %p87
      %p89 = scmp.ne.s32.totalorder %s81, %s84
      %p90 = scmp.eq.s32.totalorder %s19, 0
      %p91 = por %p89, %p90
      %p92 = scmp.ne.s32.totalorder %s81, %s84
      %p93 = scmp.eq.s32.totalorder %s24, 1
      %p94 = por %p92, %p93
      %p95 = scmp.ne.s32.totalorder %s84, %s85
      %p96 = scmp.eq.s32.totalorder %s24, 0
      %p97 = por %p95, %p96
      %p98 = scmp.ne.s32.totalorder %s84, %s85
      %p99 = scmp.eq.s32.totalorder %s25, 1
      %p100 = por %p98, %p99
      %p102 = scmp.ne.s32.totalorder %s85, %s101
      %p103 = scmp.eq.s32.totalorder %s25, 0
      %p104 = por %p102, %p103
      %s105 = ssub.s32 %s19, %s26
      %p106 = scmp.eq.s32.totalorder %s105, 0
      %s108 = sadd.s32 %s107, 1
      %s109 = scalar_select %p106, %s107, %s108
      %p112 = pneg %p106
      %p113 = scmp.eq.s32.totalorder %s19, 1
      %p114 = por %p112, %p113
      %p115 = scmp.ne.s32.totalorder %s107, %s110
      %p116 = scmp.eq.s32.totalorder %s19, 0
      %p117 = por %p115, %p116
      %p118 = scmp.ne.s32.totalorder %s107, %s110
      %p119 = scmp.eq.s32.totalorder %s24, 1
      %p120 = por %p118, %p119
      %p121 = scmp.ne.s32.totalorder %s110, %s111
      %p122 = scmp.eq.s32.totalorder %s24, 0
      %p123 = por %p121, %p122
      %p124 = scmp.ne.s32.totalorder %s110, %s111
      %p125 = scmp.eq.s32.totalorder %s25, 1
      %p126 = por %p124, %p125
      %p128 = scmp.ne.s32.totalorder %s111, %s127
      %p129 = scmp.eq.s32.totalorder %s25, 0
      %p130 = por %p128, %p129
      %s131 = ssub.s32 %s19, %s26
      %p132 = scmp.eq.s32.totalorder %s131, 0
      %s134 = sadd.s32 %s133, 1
      %s135 = scalar_select %p132, %s133, %s134
      %p138 = pneg %p132
      %p139 = scmp.eq.s32.totalorder %s19, 1
      %p140 = por %p138, %p139
      %p141 = scmp.ne.s32.totalorder %s133, %s136
      %p142 = scmp.eq.s32.totalorder %s19, 0
      %p143 = por %p141, %p142
      %p144 = scmp.ne.s32.totalorder %s133, %s136
      %p145 = scmp.eq.s32.totalorder %s24, 1
      %p146 = por %p144, %p145
      %p147 = scmp.ne.s32.totalorder %s136, %s137
      %p148 = scmp.eq.s32.totalorder %s24, 0
      %p149 = por %p147, %p148
      %p150 = scmp.ne.s32.totalorder %s136, %s137
      %p151 = scmp.eq.s32.totalorder %s25, 1
      %p152 = por %p150, %p151
      %p154 = scmp.ne.s32.totalorder %s137, %s153
      %p155 = scmp.eq.s32.totalorder %s25, 0
      %p156 = por %p154, %p155
      %s157 = ssub.s32 %s19, %s26
      %p158 = scmp.eq.s32.totalorder %s157, 0
      %s160 = sadd.s32 %s159, 1
      %s161 = scalar_select %p158, %s159, %s160
      %p164 = pneg %p158
      %p165 = scmp.eq.s32.totalorder %s19, 1
      %p166 = por %p164, %p165
      %p167 = scmp.ne.s32.totalorder %s159, %s162
      %p168 = scmp.eq.s32.totalorder %s19, 0
      %p169 = por %p167, %p168
      %p170 = scmp.ne.s32.totalorder %s159, %s162
      %p171 = scmp.eq.s32.totalorder %s24, 1
      %p172 = por %p170, %p171
      %p173 = scmp.ne.s32.totalorder %s162, %s163
      %p174 = scmp.eq.s32.totalorder %s24, 0
      %p175 = por %p173, %p174
      %p176 = scmp.ne.s32.totalorder %s162, %s163
      %p177 = scmp.eq.s32.totalorder %s25, 1
      %p178 = por %p176, %p177
      %p180 = scmp.ne.s32.totalorder %s163, %s179
      %p181 = scmp.eq.s32.totalorder %s25, 0
      %p182 = por %p180, %p181
      %s183 = ssub.s32 %s19, %s26
      %p184 = scmp.eq.s32.totalorder %s183, 0
      %s186 = sadd.s32 %s185, 1
      %s187 = scalar_select %p184, %s185, %s186
      %p190 = pneg %p184
      %p191 = scmp.eq.s32.totalorder %s19, 1
      %p192 = por %p190, %p191
      %p193 = scmp.ne.s32.totalorder %s185, %s188
      %p194 = scmp.eq.s32.totalorder %s19, 0
      %p195 = por %p193, %p194
      %p196 = scmp.ne.s32.totalorder %s185, %s188
      %p197 = scmp.eq.s32.totalorder %s24, 1
      %p198 = por %p196, %p197
      %p199 = scmp.ne.s32.totalorder %s188, %s189
      %p200 = scmp.eq.s32.totalorder %s24, 0
      %p201 = por %p199, %p200
      %p202 = scmp.ne.s32.totalorder %s188, %s189
      %p203 = scmp.eq.s32.totalorder %s25, 1
      %p204 = por %p202, %p203
      %p206 = scmp.ne.s32.totalorder %s189, %s205
      %p207 = scmp.eq.s32.totalorder %s25, 0
      %p208 = por %p206, %p207
      %s209 = ssub.s32 %s19, %s26
      %p210 = scmp.eq.s32.totalorder %s209, 0
      %s212 = sadd.s32 %s211, 1
      %s213 = scalar_select %p210, %s211, %s212
      %p216 = pneg %p210
      %p217 = scmp.eq.s32.totalorder %s19, 1
      %p218 = por %p216, %p217
      %p219 = scmp.ne.s32.totalorder %s211, %s214
      %p220 = scmp.eq.s32.totalorder %s19, 0
      %p221 = por %p219, %p220
      %p222 = scmp.ne.s32.totalorder %s211, %s214
      %p223 = scmp.eq.s32.totalorder %s24, 1
      %p224 = por %p222, %p223
      %p225 = scmp.ne.s32.totalorder %s214, %s215
      %p226 = scmp.eq.s32.totalorder %s24, 0
      %p227 = por %p225, %p226
      %p228 = scmp.ne.s32.totalorder %s214, %s215
      %p229 = scmp.eq.s32.totalorder %s25, 1
      %p230 = por %p228, %p229
      %p232 = scmp.ne.s32.totalorder %s215, %s231
      %p233 = scmp.eq.s32.totalorder %s25, 0
      %p234 = por %p232, %p233
      %p235 = scmp.le.s32.totalorder 1, %s19
      %p236 = scmp.lt.s32.totalorder %s19, 3
      %p237 = pnand %p235, %p236
      %p238 = pneg %p237
      // Predicated region
      $region9: #{tpu_custom_call.1} parent=5 // pred_check
        _
      $region10: #{tpu_custom_call.1} parent=5 // pred_check_branch
        %240 = sbr.rel (%p237) target = $region12
      $region11: #{tpu_custom_call.1} parent=5 // pred_region
        %s241 = ssub.s32 %s19, 1
      $region12: #{tpu_custom_call.1} parent=5 // pred_fallthru
        _
      %p242 = scmp.lt.s32.totalorder %s19, 2
      // Predicated region
      $region13: #{tpu_custom_call.1} parent=5 // pred_check
        %p243 = pneg %p242
      $region14: #{tpu_custom_call.1} parent=5 // pred_check_branch
        %245 = sbr.rel (%p243) target = $region16
      $region15: #{tpu_custom_call.1} parent=5 // pred_region
        // Predicated region
        $region17: #{tpu_custom_call.1} parent=15 // pred_check
          %p246 = pneg %p39
        $region18: #{tpu_custom_call.1} parent=15 // pred_check_branch
          %248 = sbr.rel (%p246) target = $region20
        $region19: #{tpu_custom_call.1} parent=15 // pred_region
          %p249 = scmp.lt.s32.totalorder %s19, 1
          %s250 = scalar_select %p249, %s19, 1
          %s251 = smul.addr %s250, 8
          %s252 = smul.addr %s251, 8
          %s253 = scalar_lea.vmem %s0, %s252
        $region20: #{tpu_custom_call.1} parent=15 // pred_fallthru
          _
        // Predicated region
        $region21: #{tpu_custom_call.1} parent=15 // pred_check
          %p254 = pneg %p65
        $region22: #{tpu_custom_call.1} parent=15 // pred_check_branch
          %256 = sbr.rel (%p254) target = $region24
        $region23: #{tpu_custom_call.1} parent=15 // pred_region
          %p257 = scmp.lt.s32.totalorder %s19, 1
          %s258 = scalar_select %p257, %s19, 1
          %s259 = smul.addr %s258, 8
          %s260 = smul.addr %s259, 8
          %s261 = scalar_lea.vmem %s1, %s260
        $region24: #{tpu_custom_call.1} parent=15 // pred_fallthru
          _
        // Predicated region
        $region25: #{tpu_custom_call.1} parent=15 // pred_check
          %p262 = pneg %p91
        $region26: #{tpu_custom_call.1} parent=15 // pred_check_branch
          %264 = sbr.rel (%p262) target = $region28
        $region27: #{tpu_custom_call.1} parent=15 // pred_region
          %p265 = scmp.lt.s32.totalorder %s19, 1
          %s266 = scalar_select %p265, %s19, 1
          %s267 = smul.addr %s266, 7
          %s268 = smul.addr %s267, 4
          %s269 = scalar_lea.vmem %s2, %s268
        $region28: #{tpu_custom_call.1} parent=15 // pred_fallthru
          _
        // Predicated region
        $region29: #{tpu_custom_call.1} parent=15 // pred_check
          %p270 = pneg %p117
        $region30: #{tpu_custom_call.1} parent=15 // pred_check_branch
          %272 = sbr.rel (%p270) target = $region32
        $region31: #{tpu_custom_call.1} parent=15 // pred_region
          %p273 = scmp.lt.s32.totalorder %s19, 1
          %s274 = scalar_select %p273, %s19, 1
          %s275 = smul.addr %s274, 24
          %s276 = smul.addr %s275, 4
          %s277 = scalar_lea.vmem %s3, %s276
        $region32: #{tpu_custom_call.1} parent=15 // pred_fallthru
          _
        // Predicated region
        $region33: #{tpu_custom_call.1} parent=15 // pred_check
          %p278 = pneg %p143
        $region34: #{tpu_custom_call.1} parent=15 // pred_check_branch
          %280 = sbr.rel (%p278) target = $region36
        $region35: #{tpu_custom_call.1} parent=15 // pred_region
          %p281 = scmp.lt.s32.totalorder %s19, 1
          %s282 = scalar_select %p281, %s19, 1
          %s283 = smul.addr %s282, 3
          %s284 = scalar_lea.vmem %s4, %s283
        $region36: #{tpu_custom_call.1} parent=15 // pred_fallthru
          _
        // Predicated region
        $region37: #{tpu_custom_call.1} parent=15 // pred_check
          %p285 = pneg %p169
        $region38: #{tpu_custom_call.1} parent=15 // pred_check_branch
          %287 = sbr.rel (%p285) target = $region40
        $region39: #{tpu_custom_call.1} parent=15 // pred_region
          %s288 = sand.u32 %s159, 1
          %s289 = scalar_lea.sflag [#allocation6], %s288
          %s290 = sand.u32 %s159, 1
          %s291 = smul.addr %s290, 96
          %s292 = scalar_lea.vmem [#allocation5], %s291
          %294 = vsyncadd %s289, 0
          %s295 = smul.addr %s19, 24
          %s296 = smul.addr %s295, 4
          %s297 = scalar_lea.hbm %s5, %s296
          %s298 = sshll.u32 %s297, 4
          %s299 = int_to_ptr.hbm [resolvable:$true] %s298
          %s300 = sshll.u32 %s292, 4
          %s301 = int_to_ptr.vmem [resolvable:$true] %s300
          %306 = dma.hbm_to_vmem [thread:$0]  %s299, 1536, %s301, %s289, 64, 64, 4
        $region40: #{tpu_custom_call.1} parent=15 // pred_fallthru
          _
        // Predicated region
        $region41: #{tpu_custom_call.1} parent=15 // pred_check
          %p307 = pneg %p195
        $region42: #{tpu_custom_call.1} parent=15 // pred_check_branch
          %309 = sbr.rel (%p307) target = $region44
        $region43: #{tpu_custom_call.1} parent=15 // pred_region
          %p310 = scmp.lt.s32.totalorder %s19, 1
          %s311 = scalar_select %p310, %s19, 1
          %s312 = scalar_lea.vmem %s6, %s311
        $region44: #{tpu_custom_call.1} parent=15 // pred_fallthru
          _
      $region16: #{tpu_custom_call.1} parent=5 // pred_fallthru
        _
      %p313 = scmp.le.s32.totalorder 1, %s19
      %p314 = scmp.lt.s32.totalorder %s19, 3
      %p315 = pnand %p313, %p314
      %p316 = pneg %p315
      // Predicated region
      $region45: #{tpu_custom_call.1} parent=5 // pred_check
        _
      $region46: #{tpu_custom_call.1} parent=5 // pred_check_branch
        %318 = sbr.rel (%p315) target = $region48
      $region47: #{tpu_custom_call.1} parent=5 // pred_region
        %s319 = ssub.s32 %s19, 1
        %s320 = sand.u32 %s162, 1
        %s321 = scalar_lea.sflag [#allocation6], %s320
        %s322 = sand.u32 %s162, 1
        %s323 = smul.addr %s322, 96
        %s324 = scalar_lea.vmem [#allocation5], %s323
        // Predicated region
        $region49: #{tpu_custom_call.1} parent=47 // pred_check
          %p325 = pneg %p175
        $region50: #{tpu_custom_call.1} parent=47 // pred_check_branch
          %327 = sbr.rel (%p325) target = $region52
        $region51: #{tpu_custom_call.1} parent=47 // pred_region
          %329 = dma.done %s321, 1536
        $region52: #{tpu_custom_call.1} parent=47 // pred_fallthru
          _
        %p330 = scmp.lt.s32.totalorder %s24, 1
        %s331 = scalar_select %p330, %s24, 1
        %s332 = smul.addr %s331, 8
        %s333 = smul.addr %s332, 8
        %s334 = scalar_lea.vmem %s0, %s333
        %p335 = pneg %p45
        %p336 = pneg %p42
        %p337 = scmp.lt.s32.totalorder %s24, 1
        %s338 = scalar_select %p337, %s24, 1
        %s339 = smul.addr %s338, 8
        %s340 = smul.addr %s339, 8
        %s341 = scalar_lea.vmem %s1, %s340
        %p342 = pneg %p71
        %p343 = pneg %p68
        %p344 = scmp.lt.s32.totalorder %s24, 1
        %s345 = scalar_select %p344, %s24, 1
        %s346 = smul.addr %s345, 7
        %s347 = smul.addr %s346, 4
        %s348 = scalar_lea.vmem %s2, %s347
        %p349 = pneg %p97
        %p350 = pneg %p94
        %p351 = scmp.lt.s32.totalorder %s24, 1
        %s352 = scalar_select %p351, %s24, 1
        %s353 = smul.addr %s352, 24
        %s354 = smul.addr %s353, 4
        %s355 = scalar_lea.vmem %s3, %s354
        %p356 = pneg %p123
        %p357 = pneg %p120
        %p358 = scmp.lt.s32.totalorder %s24, 1
        %s359 = scalar_select %p358, %s24, 1
        %s360 = smul.addr %s359, 3
        %s361 = scalar_lea.vmem %s4, %s360
        %p362 = pneg %p149
        %p363 = pneg %p146
        %s364 = sand.u32 %s162, 1
        %s365 = scalar_lea.sflag [#allocation6], %s364
        %s366 = sand.u32 %s162, 1
        %s367 = smul.addr %s366, 96
        %s368 = scalar_lea.vmem [#allocation5], %s367
        %p369 = pneg %p175
        %p370 = pneg %p172
        %p371 = scmp.lt.s32.totalorder %s24, 1
        %s372 = scalar_select %p371, %s24, 1
        %s373 = scalar_lea.vmem %s6, %s372
        %p374 = pneg %p201
        %p375 = pneg %p198
        %p376 = pneg %p227
        %p377 = pneg %p224
        %s378 = sand.u32 %s214, 1
        %s379 = scalar_lea.sflag [#allocation7], %s378
        %s380 = sand.u32 %s214, 1
        %s381 = smul.addr %s380, 8
        %s382 = scalar_lea.vmem [#allocation8], %s381
        %p383 = scmp.lt.s32.totalorder %s24, 1
        %s384 = scalar_select %p383, %s24, 1
        %s385 = smul.addr %s384, 8
        %s386 = smul.addr %s385, 8
        %s387 = scalar_lea.vmem %s0, %s386
        %p388 = scmp.lt.s32.totalorder %s24, 1
        %s389 = scalar_select %p388, %s24, 1
        %s390 = smul.addr %s389, 8
        %s391 = smul.addr %s390, 8
        %s392 = scalar_lea.vmem %s1, %s391
        %p393 = scmp.lt.s32.totalorder %s24, 1
        %s394 = scalar_select %p393, %s24, 1
        %s395 = smul.addr %s394, 7
        %s396 = smul.addr %s395, 4
        %s397 = scalar_lea.vmem %s2, %s396
        %p398 = scmp.lt.s32.totalorder %s24, 1
        %s399 = scalar_select %p398, %s24, 1
        %s400 = smul.addr %s399, 24
        %s401 = smul.addr %s400, 4
        %s402 = scalar_lea.vmem %s3, %s401
        %p403 = scmp.lt.s32.totalorder %s24, 1
        %s404 = scalar_select %p403, %s24, 1
        %s405 = smul.addr %s404, 3
        %s406 = scalar_lea.vmem %s4, %s405
        %p407 = scmp.lt.s32.totalorder %s24, 1
        %s408 = scalar_select %p407, %s24, 1
        %s409 = scalar_lea.vmem %s6, %s408
        %v411 = vld [vmem:[%s397] sm:$0xf]
        %v412 = vld [vmem:[%s397 + $0x4] sm:$0xf]
        %v413 = vld [vmem:[%s397 + $0x8] sm:$0xf]
        %v414 = vld [vmem:[%s397 + $0xc] sm:$0xf]
        %v415 = vld [vmem:[%s397 + $0x10] sm:$0xf]
        %v416 = vld [vmem:[%s397 + $0x14] sm:$0xf]
        %v417 = vld [vmem:[%s397 + $0x18] sm:$0x1]
        %v418 = vld [vmem:[%s387] sm:$0xff]
        %v419 = vld [vmem:[%s387 + $0x8] sm:$0xff]
        %v420 = vld [vmem:[%s387 + $0x10] sm:$0xff]
        %v421 = vld [vmem:[%s387 + $0x18] sm:$0xff]
        %v422 = vld [vmem:[%s387 + $0x20] sm:$0xff]
        %v423 = vld [vmem:[%s387 + $0x28] sm:$0xff]
        %v424 = vld [vmem:[%s387 + $0x30] sm:$0xff]
        %v425 = vld [vmem:[%s387 + $0x38] sm:$0xff]
        %v426 = vld [vmem:[%s392] sm:$0xff]
        %v427 = vld [vmem:[%s392 + $0x8] sm:$0xff]
        %v428 = vld [vmem:[%s392 + $0x10] sm:$0xff]
        %v429 = vld [vmem:[%s392 + $0x18] sm:$0xff]
        %v430 = vld [vmem:[%s392 + $0x20] sm:$0xff]
        %v431 = vld [vmem:[%s392 + $0x28] sm:$0xff]
        %v432 = vld [vmem:[%s392 + $0x30] sm:$0xff]
        %v433 = vld [vmem:[%s392 + $0x38] sm:$0xff]
        %v434 = vlaneseq
        %v435 = vand.u32 %v434, 127
        %436 = vset.pattern.permute.xlu0 0
        %437 = vperm.xlu0 %436, %v418
        %v438 = vpop.permute.xlu0 %437
        %439 = vset.pattern.permute.xlu0 0
        %440 = vperm.xlu0 %439, %v419
        %v441 = vpop.permute.xlu0 %440
        %442 = vset.pattern.permute.xlu0 0
        %443 = vperm.xlu0 %442, %v420
        %v444 = vpop.permute.xlu0 %443
        %445 = vset.pattern.permute.xlu0 0
        %446 = vperm.xlu0 %445, %v421
        %v447 = vpop.permute.xlu0 %446
        %448 = vset.pattern.permute.xlu0 0
        %449 = vperm.xlu0 %448, %v422
        %v450 = vpop.permute.xlu0 %449
        %451 = vset.pattern.permute.xlu0 0
        %452 = vperm.xlu0 %451, %v423
        %v453 = vpop.permute.xlu0 %452
        %454 = vset.pattern.permute.xlu0 0
        %455 = vperm.xlu0 %454, %v424
        %v456 = vpop.permute.xlu0 %455
        %457 = vset.pattern.permute.xlu0 0
        %458 = vperm.xlu0 %457, %v425
        %v459 = vpop.permute.xlu0 %458
        %vm460 = vcmp.eq.s32.totalorder %v435, %v438
        %vm461 = vcmp.eq.s32.totalorder %v435, %v441
        %vm462 = vcmp.eq.s32.totalorder %v435, %v444
        %vm463 = vcmp.eq.s32.totalorder %v435, %v447
        %vm464 = vcmp.eq.s32.totalorder %v435, %v450
        %vm465 = vcmp.eq.s32.totalorder %v435, %v453
        %vm466 = vcmp.eq.s32.totalorder %v435, %v456
        %vm467 = vcmp.eq.s32.totalorder %v435, %v459
        %v468 = vsel %vm460, 1.0, 0.0
        %v469 = vsel %vm461, 1.0, 0.0
        %v470 = vsel %vm462, 1.0, 0.0
        %v471 = vsel %vm463, 1.0, 0.0
        %v472 = vsel %vm464, 1.0, 0.0
        %v473 = vsel %vm465, 1.0, 0.0
        %v474 = vsel %vm466, 1.0, 0.0
        %v475 = vsel %vm467, 1.0, 0.0
        %v476 = vpack.c.bf16 %v469, %v468
        %v477 = vpack.c.bf16 %v471, %v470
        %v478 = vpack.c.bf16 %v473, %v472
        %v479 = vpack.c.bf16 %v475, %v474
        %480 = vset.pattern.permute.xlu0 0
        %481 = vperm.xlu0 %480, %v426
        %v482 = vpop.permute.xlu0 %481
        %483 = vset.pattern.permute.xlu0 0
        %484 = vperm.xlu0 %483, %v427
        %v485 = vpop.permute.xlu0 %484
        %486 = vset.pattern.permute.xlu0 0
        %487 = vperm.xlu0 %486, %v428
        %v488 = vpop.permute.xlu0 %487
        %489 = vset.pattern.permute.xlu0 0
        %490 = vperm.xlu0 %489, %v429
        %v491 = vpop.permute.xlu0 %490
        %492 = vset.pattern.permute.xlu0 0
        %493 = vperm.xlu0 %492, %v430
        %v494 = vpop.permute.xlu0 %493
        %495 = vset.pattern.permute.xlu0 0
        %496 = vperm.xlu0 %495, %v431
        %v497 = vpop.permute.xlu0 %496
        %498 = vset.pattern.permute.xlu0 0
        %499 = vperm.xlu0 %498, %v432
        %v500 = vpop.permute.xlu0 %499
        %501 = vset.pattern.permute.xlu0 0
        %502 = vperm.xlu0 %501, %v433
        %v503 = vpop.permute.xlu0 %502
        %vm504 = vcmp.eq.s32.totalorder %v435, %v482
        %vm505 = vcmp.eq.s32.totalorder %v435, %v485
        %vm506 = vcmp.eq.s32.totalorder %v435, %v488
        %vm507 = vcmp.eq.s32.totalorder %v435, %v491
        %vm508 = vcmp.eq.s32.totalorder %v435, %v494
        %vm509 = vcmp.eq.s32.totalorder %v435, %v497
        %vm510 = vcmp.eq.s32.totalorder %v435, %v500
        %vm511 = vcmp.eq.s32.totalorder %v435, %v503
        %v512 = vsel %vm504, 1.0, 0.0
        %v513 = vsel %vm505, 1.0, 0.0
        %v514 = vsel %vm506, 1.0, 0.0
        %v515 = vsel %vm507, 1.0, 0.0
        %v516 = vsel %vm508, 1.0, 0.0
        %v517 = vsel %vm509, 1.0, 0.0
        %v518 = vsel %vm510, 1.0, 0.0
        %v519 = vsel %vm511, 1.0, 0.0
        %v520 = vpack.c.bf16 %v513, %v512
        %v521 = vpack.c.bf16 %v515, %v514
        %v522 = vpack.c.bf16 %v517, %v516
        %v523 = vpack.c.bf16 %v519, %v518
        %v531 = vunpack.c.l.b16 %v411
        %v532 = vunpack.c.l.b16 %v412
        %v533 = vunpack.c.l.b16 %v413
        %v534 = vunpack.c.l.b16 %v414
        %v535 = vunpack.c.l.b16 %v415
        %v536 = vunpack.c.l.b16 %v416
        %v537 = vunpack.c.l.b16 %v417
        %v538 = vpack.c.b16 %v532, %v531
        %v539 = vpack.c.b16 %v534, %v533
        %v540 = vpack.c.b16 %v536, %v535
        %v541 = vpack.c.b16 %v537, %v537
        %vm545 = vcmask 408576
        %v547 = vsel %vm545, %v476, 0
        %v550 = vsel %vm545, %v477, 0
        %v553 = vsel %vm545, %v478, 0
        %v556 = vsel %vm545, %v479, 0
        %vm558 = vcmask 1040384
        %v560 = vsel %vm558, %v541, 0
        %562 = vmatpush.bf16.msra.mxu0 0
        %563 = vmatpush.bf16.msra.mxu0 0
        %564 = vmatpush.bf16.msra.mxu0 0
        %565 = vmatpush.bf16.msra.mxu0 0
        %566 = vmatpush.bf16.msra.mxu0 %v560
        %567 = vmatpush.bf16.msra.mxu0 %v540
        %568 = vmatpush.bf16.msra.mxu0 %v539
        %569 = vmatpush.bf16.msra.mxu0 %v538
        %570 = vmatmul.bf16.gmra.mxu0 %v547
        %v571 = vpop.f32.mrf.mxu0
        %v572 = vadd.f32 0.0, %v571
        %v573 = vpop.f32.mrf.mxu0
        %v574 = vadd.f32 0.0, %v573
        %575 = vmatmul.bf16.gmra.mxu0 %v550
        %v576 = vpop.f32.mrf.mxu0
        %v577 = vadd.f32 0.0, %v576
        %v578 = vpop.f32.mrf.mxu0
        %v579 = vadd.f32 0.0, %v578
        %580 = vmatmul.bf16.gmra.mxu0 %v553
        %v581 = vpop.f32.mrf.mxu0
        %v582 = vadd.f32 0.0, %v581
        %v583 = vpop.f32.mrf.mxu0
        %v584 = vadd.f32 0.0, %v583
        %585 = vmatmul.bf16.gmra.mxu0 %v556
        %v586 = vpop.f32.mrf.mxu0
        %v587 = vadd.f32 0.0, %v586
        %v588 = vpop.f32.mrf.mxu0
        %v589 = vadd.f32 0.0, %v588
        %590 = vdwg.mxu0
        %v592 = vsel %vm545, %v520, 0
        %v595 = vsel %vm545, %v521, 0
        %v598 = vsel %vm545, %v522, 0
        %v601 = vsel %vm545, %v523, 0
        %603 = vmatpush.bf16.msra.mxu0 0
        %604 = vmatpush.bf16.msra.mxu0 0
        %605 = vmatpush.bf16.msra.mxu0 0
        %606 = vmatpush.bf16.msra.mxu0 0
        %607 = vmatpush.bf16.msra.mxu0 %v560
        %608 = vmatpush.bf16.msra.mxu0 %v540
        %609 = vmatpush.bf16.msra.mxu0 %v539
        %610 = vmatpush.bf16.msra.mxu0 %v538
        %611 = vmatmul.bf16.gmra.mxu0 %v592
        %v612 = vpop.f32.mrf.mxu0
        %v613 = vadd.f32 0.0, %v612
        %v614 = vpop.f32.mrf.mxu0
        %v615 = vadd.f32 0.0, %v614
        %616 = vmatmul.bf16.gmra.mxu0 %v595
        %v617 = vpop.f32.mrf.mxu0
        %v618 = vadd.f32 0.0, %v617
        %v619 = vpop.f32.mrf.mxu0
        %v620 = vadd.f32 0.0, %v619
        %621 = vmatmul.bf16.gmra.mxu0 %v598
        %v622 = vpop.f32.mrf.mxu0
        %v623 = vadd.f32 0.0, %v622
        %v624 = vpop.f32.mrf.mxu0
        %v625 = vadd.f32 0.0, %v624
        %626 = vmatmul.bf16.gmra.mxu0 %v601
        %v627 = vpop.f32.mrf.mxu0
        %v628 = vadd.f32 0.0, %v627
        %v629 = vpop.f32.mrf.mxu0
        %v630 = vadd.f32 0.0, %v629
        %631 = vdwg.mxu0
        %640 = vrot.lane.b32.xlu0 %v613, 32
        %v641 = vpop.permute.xlu0 %640
        %642 = vrot.lane.b32.xlu0 %v615, 32
        %v643 = vpop.permute.xlu0 %642
        %644 = vrot.lane.b32.xlu0 %v618, 32
        %v645 = vpop.permute.xlu0 %644
        %646 = vrot.lane.b32.xlu0 %v620, 32
        %v647 = vpop.permute.xlu0 %646
        %648 = vrot.lane.b32.xlu0 %v623, 32
        %v649 = vpop.permute.xlu0 %648
        %650 = vrot.lane.b32.xlu0 %v625, 32
        %v651 = vpop.permute.xlu0 %650
        %652 = vrot.lane.b32.xlu0 %v628, 32
        %v653 = vpop.permute.xlu0 %652
        %654 = vrot.lane.b32.xlu0 %v630, 32
        %v655 = vpop.permute.xlu0 %654
        %vm664 = vcmask 261120
        %v665 = vsel %vm664, %v572, %v641
        %v666 = vsel %vm664, %v574, %v643
        %v667 = vsel %vm664, %v577, %v645
        %v668 = vsel %vm664, %v579, %v647
        %v669 = vsel %vm664, %v582, %v649
        %v670 = vsel %vm664, %v584, %v651
        %v671 = vsel %vm664, %v587, %v653
        %v672 = vsel %vm664, %v589, %v655
        %v673 = vpack.c.bf16 %v666, %v665
        %v674 = vpack.c.bf16 %v668, %v667
        %v675 = vpack.c.bf16 %v670, %v669
        %v676 = vpack.c.bf16 %v672, %v671
        %v677 = vld [vmem:[%s402] sm:$0xf]
        %v678 = vld [vmem:[%s402 + $0x4] sm:$0xf]
        %v679 = vld [vmem:[%s402 + $0x8] sm:$0xf]
        %v680 = vld [vmem:[%s402 + $0xc] sm:$0xf]
        %v681 = vld [vmem:[%s402 + $0x10] sm:$0xf]
        %v682 = vld [vmem:[%s402 + $0x14] sm:$0xf]
        %v683 = vld [vmem:[%s402 + $0x18] sm:$0xf]
        %v684 = vld [vmem:[%s402 + $0x1c] sm:$0xf]
        %v685 = vld [vmem:[%s406] sm:$0x1]
        %v687 = vperm.slane %v685, 0
        %v697 = vunpack.c.l.b16 %v677
        %v698 = vunpack.c.l.b16 %v678
        %v699 = vunpack.c.l.b16 %v679
        %v700 = vunpack.c.l.b16 %v680
        %v701 = vunpack.c.l.b16 %v681
        %v702 = vunpack.c.l.b16 %v682
        %v703 = vunpack.c.l.b16 %v683
        %v704 = vunpack.c.l.b16 %v684
        %v705 = vpack.c.b16 %v698, %v697
        %v706 = vpack.c.b16 %v700, %v699
        %v707 = vpack.c.b16 %v702, %v701
        %v708 = vpack.c.b16 %v704, %v703
        %vm713 = vcmask 523264
        %v715 = vsel %vm713, %v673, 0
        %v718 = vsel %vm713, %v674, 0
        %v721 = vsel %vm713, %v675, 0
        %v724 = vsel %vm713, %v676, 0
        %726 = vmatpush.bf16.msra.mxu0 0
        %727 = vmatpush.bf16.msra.mxu0 0
        %728 = vmatpush.bf16.msra.mxu0 0
        %729 = vmatpush.bf16.msra.mxu0 0
        %730 = vmatpush.bf16.msra.mxu0 %v708
        %731 = vmatpush.bf16.msra.mxu0 %v707
        %732 = vmatpush.bf16.msra.mxu0 %v706
        %733 = vmatpush.bf16.msra.mxu0 %v705
        %734 = vmatmul.bf16.gmra.mxu0 %v715
        %v735 = vpop.f32.mrf.mxu0
        %v736 = vadd.f32 %v687, %v735
        %v737 = vpop.f32.mrf.mxu0
        %v738 = vadd.f32 %v687, %v737
        %739 = vmatmul.bf16.gmra.mxu0 %v718
        %v740 = vpop.f32.mrf.mxu0
        %v741 = vadd.f32 %v687, %v740
        %v742 = vpop.f32.mrf.mxu0
        %v743 = vadd.f32 %v687, %v742
        %744 = vmatmul.bf16.gmra.mxu0 %v721
        %v745 = vpop.f32.mrf.mxu0
        %v746 = vadd.f32 %v687, %v745
        %v747 = vpop.f32.mrf.mxu0
        %v748 = vadd.f32 %v687, %v747
        %749 = vmatmul.bf16.gmra.mxu0 %v724
        %v750 = vpop.f32.mrf.mxu0
        %v751 = vadd.f32 %v687, %v750
        %v752 = vpop.f32.mrf.mxu0
        %v753 = vadd.f32 %v687, %v752
        %754 = vdwg.mxu0
        %755 = vst.msk [vmem:[#allocation2] sm:$0xff] %vm713, %v736
        %756 = vst.msk [vmem:[#allocation2 + $0x8] sm:$0xff] %vm713, %v738
        %757 = vst.msk [vmem:[#allocation2 + $0x10] sm:$0xff] %vm713, %v741
        %758 = vst.msk [vmem:[#allocation2 + $0x18] sm:$0xff] %vm713, %v743
        %759 = vst.msk [vmem:[#allocation2 + $0x20] sm:$0xff] %vm713, %v746
        %760 = vst.msk [vmem:[#allocation2 + $0x28] sm:$0xff] %vm713, %v748
        %761 = vst.msk [vmem:[#allocation2 + $0x30] sm:$0xff] %vm713, %v751
        %762 = vst.msk [vmem:[#allocation2 + $0x38] sm:$0xff] %vm713, %v753
        %s763 = scalar_lea.vmem %s402, 32
        %v764 = vld [vmem:[%s763] sm:$0xf]
        %v765 = vld [vmem:[%s763 + $0x4] sm:$0xf]
        %v766 = vld [vmem:[%s763 + $0x8] sm:$0xf]
        %v767 = vld [vmem:[%s763 + $0xc] sm:$0xf]
        %v768 = vld [vmem:[%s763 + $0x10] sm:$0xf]
        %v769 = vld [vmem:[%s763 + $0x14] sm:$0xf]
        %v770 = vld [vmem:[%s763 + $0x18] sm:$0xf]
        %v771 = vld [vmem:[%s763 + $0x1c] sm:$0xf]
        %s772 = scalar_lea.vmem %s406, 1
        %v773 = vld [vmem:[%s772] sm:$0x1]
        %v775 = vperm.slane %v773, 0
        %v785 = vunpack.c.l.b16 %v764
        %v786 = vunpack.c.l.b16 %v765
        %v787 = vunpack.c.l.b16 %v766
        %v788 = vunpack.c.l.b16 %v767
        %v789 = vunpack.c.l.b16 %v768
        %v790 = vunpack.c.l.b16 %v769
        %v791 = vunpack.c.l.b16 %v770
        %v792 = vunpack.c.l.b16 %v771
        %v793 = vpack.c.b16 %v786, %v785
        %v794 = vpack.c.b16 %v788, %v787
        %v795 = vpack.c.b16 %v790, %v789
        %v796 = vpack.c.b16 %v792, %v791
        %801 = vmatpush.bf16.msra.mxu0 0
        %802 = vmatpush.bf16.msra.mxu0 0
        %803 = vmatpush.bf16.msra.mxu0 0
        %804 = vmatpush.bf16.msra.mxu0 0
        %805 = vmatpush.bf16.msra.mxu0 %v796
        %806 = vmatpush.bf16.msra.mxu0 %v795
        %807 = vmatpush.bf16.msra.mxu0 %v794
        %808 = vmatpush.bf16.msra.mxu0 %v793
        %809 = vmatmul.bf16.gmra.mxu0 %v715
        %v810 = vpop.f32.mrf.mxu0
        %v811 = vadd.f32 %v775, %v810
        %v812 = vpop.f32.mrf.mxu0
        %v813 = vadd.f32 %v775, %v812
        %814 = vmatmul.bf16.gmra.mxu0 %v718
        %v815 = vpop.f32.mrf.mxu0
        %v816 = vadd.f32 %v775, %v815
        %v817 = vpop.f32.mrf.mxu0
        %v818 = vadd.f32 %v775, %v817
        %819 = vmatmul.bf16.gmra.mxu0 %v721
        %v820 = vpop.f32.mrf.mxu0
        %v821 = vadd.f32 %v775, %v820
        %v822 = vpop.f32.mrf.mxu0
        %v823 = vadd.f32 %v775, %v822
        %824 = vmatmul.bf16.gmra.mxu0 %v724
        %v825 = vpop.f32.mrf.mxu0
        %v826 = vadd.f32 %v775, %v825
        %v827 = vpop.f32.mrf.mxu0
        %v828 = vadd.f32 %v775, %v827
        %829 = vdwg.mxu0
        %830 = vst.msk [vmem:[#allocation3] sm:$0xff] %vm713, %v811
        %831 = vst.msk [vmem:[#allocation3 + $0x8] sm:$0xff] %vm713, %v813
        %832 = vst.msk [vmem:[#allocation3 + $0x10] sm:$0xff] %vm713, %v816
        %833 = vst.msk [vmem:[#allocation3 + $0x18] sm:$0xff] %vm713, %v818
        %834 = vst.msk [vmem:[#allocation3 + $0x20] sm:$0xff] %vm713, %v821
        %835 = vst.msk [vmem:[#allocation3 + $0x28] sm:$0xff] %vm713, %v823
        %836 = vst.msk [vmem:[#allocation3 + $0x30] sm:$0xff] %vm713, %v826
        %837 = vst.msk [vmem:[#allocation3 + $0x38] sm:$0xff] %vm713, %v828
        %s838 = scalar_lea.vmem %s402, 64
        %v839 = vld [vmem:[%s838] sm:$0xf]
        %v840 = vld [vmem:[%s838 + $0x4] sm:$0xf]
        %v841 = vld [vmem:[%s838 + $0x8] sm:$0xf]
        %v842 = vld [vmem:[%s838 + $0xc] sm:$0xf]
        %v843 = vld [vmem:[%s838 + $0x10] sm:$0xf]
        %v844 = vld [vmem:[%s838 + $0x14] sm:$0xf]
        %v845 = vld [vmem:[%s838 + $0x18] sm:$0xf]
        %v846 = vld [vmem:[%s838 + $0x1c] sm:$0xf]
        %s847 = scalar_lea.vmem %s406, 2
        %v848 = vld [vmem:[%s847] sm:$0x1]
        %v850 = vperm.slane %v848, 0
        %v860 = vunpack.c.l.b16 %v839
        %v861 = vunpack.c.l.b16 %v840
        %v862 = vunpack.c.l.b16 %v841
        %v863 = vunpack.c.l.b16 %v842
        %v864 = vunpack.c.l.b16 %v843
        %v865 = vunpack.c.l.b16 %v844
        %v866 = vunpack.c.l.b16 %v845
        %v867 = vunpack.c.l.b16 %v846
        %v868 = vpack.c.b16 %v861, %v860
        %v869 = vpack.c.b16 %v863, %v862
        %v870 = vpack.c.b16 %v865, %v864
        %v871 = vpack.c.b16 %v867, %v866
        %876 = vmatpush.bf16.msra.mxu0 0
        %877 = vmatpush.bf16.msra.mxu0 0
        %878 = vmatpush.bf16.msra.mxu0 0
        %879 = vmatpush.bf16.msra.mxu0 0
        %880 = vmatpush.bf16.msra.mxu0 %v871
        %881 = vmatpush.bf16.msra.mxu0 %v870
        %882 = vmatpush.bf16.msra.mxu0 %v869
        %883 = vmatpush.bf16.msra.mxu0 %v868
        %884 = vmatmul.bf16.gmra.mxu0 %v715
        %v885 = vpop.f32.mrf.mxu0
        %v886 = vadd.f32 %v850, %v885
        %v887 = vpop.f32.mrf.mxu0
        %v888 = vadd.f32 %v850, %v887
        %889 = vmatmul.bf16.gmra.mxu0 %v718
        %v890 = vpop.f32.mrf.mxu0
        %v891 = vadd.f32 %v850, %v890
        %v892 = vpop.f32.mrf.mxu0
        %v893 = vadd.f32 %v850, %v892
        %894 = vmatmul.bf16.gmra.mxu0 %v721
        %v895 = vpop.f32.mrf.mxu0
        %v896 = vadd.f32 %v850, %v895
        %v897 = vpop.f32.mrf.mxu0
        %v898 = vadd.f32 %v850, %v897
        %899 = vmatmul.bf16.gmra.mxu0 %v724
        %v900 = vpop.f32.mrf.mxu0
        %v901 = vadd.f32 %v850, %v900
        %v902 = vpop.f32.mrf.mxu0
        %v903 = vadd.f32 %v850, %v902
        %904 = vdwg.mxu0
        %905 = vst.msk [vmem:[#allocation4] sm:$0xff] %vm713, %v886
        %906 = vst.msk [vmem:[#allocation4 + $0x8] sm:$0xff] %vm713, %v888
        %907 = vst.msk [vmem:[#allocation4 + $0x10] sm:$0xff] %vm713, %v891
        %908 = vst.msk [vmem:[#allocation4 + $0x18] sm:$0xff] %vm713, %v893
        %909 = vst.msk [vmem:[#allocation4 + $0x20] sm:$0xff] %vm713, %v896
        %910 = vst.msk [vmem:[#allocation4 + $0x28] sm:$0xff] %vm713, %v898
        %911 = vst.msk [vmem:[#allocation4 + $0x30] sm:$0xff] %vm713, %v901
        %912 = vst.msk [vmem:[#allocation4 + $0x38] sm:$0xff] %vm713, %v903
        %v913 = vld [vmem:[%s324] sm:$0xf]
        %v914 = vld [vmem:[%s324 + $0x4] sm:$0xf]
        %v915 = vld [vmem:[%s324 + $0x8] sm:$0xf]
        %v916 = vld [vmem:[%s324 + $0xc] sm:$0xf]
        %v917 = vld [vmem:[%s324 + $0x10] sm:$0xf]
        %v918 = vld [vmem:[%s324 + $0x14] sm:$0xf]
        %v919 = vld [vmem:[%s324 + $0x18] sm:$0xf]
        %v920 = vld [vmem:[%s324 + $0x1c] sm:$0xf]
        %s921 = scalar_lea.vmem %s324, 32 [#allocation5]
        %v922 = vld [vmem:[%s921] sm:$0xf]
        %v923 = vld [vmem:[%s921 + $0x4] sm:$0xf]
        %v924 = vld [vmem:[%s921 + $0x8] sm:$0xf]
        %v925 = vld [vmem:[%s921 + $0xc] sm:$0xf]
        %v926 = vld [vmem:[%s921 + $0x10] sm:$0xf]
        %v927 = vld [vmem:[%s921 + $0x14] sm:$0xf]
        %v928 = vld [vmem:[%s921 + $0x18] sm:$0xf]
        %v929 = vld [vmem:[%s921 + $0x1c] sm:$0xf]
        %s930 = scalar_lea.vmem %s324, 64 [#allocation5]
        %v931 = vld [vmem:[%s930] sm:$0xf]
        %v932 = vld [vmem:[%s930 + $0x4] sm:$0xf]
        %v933 = vld [vmem:[%s930 + $0x8] sm:$0xf]
        %v934 = vld [vmem:[%s930 + $0xc] sm:$0xf]
        %v935 = vld [vmem:[%s930 + $0x10] sm:$0xf]
        %v936 = vld [vmem:[%s930 + $0x14] sm:$0xf]
        %v937 = vld [vmem:[%s930 + $0x18] sm:$0xf]
        %v938 = vld [vmem:[%s930 + $0x1c] sm:$0xf]
        %v939 = vld [vmem:[%s409] sm:$0x1]
        %v941 = vperm.slane %v939, 0
        %v943 = vld [vmem:[#allocation2] sm:$0xff]
        %v944 = vld [vmem:[#allocation3] sm:$0xff]
        %v945 = vld [vmem:[#allocation4] sm:$0xff]
        %v954 = vunpack.c.l.b16 %v913
        %v955 = vunpack.c.l.b16 %v914
        %v956 = vunpack.c.l.b16 %v915
        %v957 = vunpack.c.l.b16 %v916
        %v958 = vunpack.c.l.b16 %v917
        %v959 = vunpack.c.l.b16 %v918
        %v960 = vunpack.c.l.b16 %v919
        %v961 = vunpack.c.l.b16 %v920
        %v962 = vpack.c.b16 %v955, %v954
        %v963 = vpack.c.b16 %v957, %v956
        %v964 = vpack.c.b16 %v959, %v958
        %v965 = vpack.c.b16 %v961, %v960
        %v971 = vsel %vm713, 0, 0
        %973 = vmatpush.bf16.msra.mxu0 0
        %974 = vmatpush.bf16.msra.mxu0 0
        %975 = vmatpush.bf16.msra.mxu0 0
        %976 = vmatpush.bf16.msra.mxu0 0
        %977 = vmatpush.bf16.msra.mxu0 %v965
        %978 = vmatpush.bf16.msra.mxu0 %v964
        %979 = vmatpush.bf16.msra.mxu0 %v963
        %980 = vmatpush.bf16.msra.mxu0 %v962
        %981 = vmatmul.bf16.gmra.mxu0 %v971
        %v982 = vpop.f32.mrf.mxu0
        %v983 = vadd.f32 0.0, %v982
        %v984 = vpop.f32.mrf.mxu0
        %985 = vdwg.mxu0
        %v994 = vunpack.c.l.b16 %v922
        %v995 = vunpack.c.l.b16 %v923
        %v996 = vunpack.c.l.b16 %v924
        %v997 = vunpack.c.l.b16 %v925
        %v998 = vunpack.c.l.b16 %v926
        %v999 = vunpack.c.l.b16 %v927
        %v1000 = vunpack.c.l.b16 %v928
        %v1001 = vunpack.c.l.b16 %v929
        %v1002 = vpack.c.b16 %v995, %v994
        %v1003 = vpack.c.b16 %v997, %v996
        %v1004 = vpack.c.b16 %v999, %v998
        %v1005 = vpack.c.b16 %v1001, %v1000
        %1010 = vmatpush.bf16.msra.mxu0 0
        %1011 = vmatpush.bf16.msra.mxu0 0
        %1012 = vmatpush.bf16.msra.mxu0 0
        %1013 = vmatpush.bf16.msra.mxu0 0
        %1014 = vmatpush.bf16.msra.mxu0 %v1005
        %1015 = vmatpush.bf16.msra.mxu0 %v1004
        %1016 = vmatpush.bf16.msra.mxu0 %v1003
        %1017 = vmatpush.bf16.msra.mxu0 %v1002
        %1018 = vmatmul.bf16.gmra.mxu0 %v971
        %v1019 = vpop.f32.mrf.mxu0
        %v1020 = vadd.f32 0.0, %v1019
        %v1021 = vpop.f32.mrf.mxu0
        %1022 = vdwg.mxu0
        %v1031 = vunpack.c.l.b16 %v931
        %v1032 = vunpack.c.l.b16 %v932
        %v1033 = vunpack.c.l.b16 %v933
        %v1034 = vunpack.c.l.b16 %v934
        %v1035 = vunpack.c.l.b16 %v935
        %v1036 = vunpack.c.l.b16 %v936
        %v1037 = vunpack.c.l.b16 %v937
        %v1038 = vunpack.c.l.b16 %v938
        %v1039 = vpack.c.b16 %v1032, %v1031
        %v1040 = vpack.c.b16 %v1034, %v1033
        %v1041 = vpack.c.b16 %v1036, %v1035
        %v1042 = vpack.c.b16 %v1038, %v1037
        %1047 = vmatpush.bf16.msra.mxu0 0
        %1048 = vmatpush.bf16.msra.mxu0 0
        %1049 = vmatpush.bf16.msra.mxu0 0
        %1050 = vmatpush.bf16.msra.mxu0 0
        %1051 = vmatpush.bf16.msra.mxu0 %v1042
        %1052 = vmatpush.bf16.msra.mxu0 %v1041
        %1053 = vmatpush.bf16.msra.mxu0 %v1040
        %1054 = vmatpush.bf16.msra.mxu0 %v1039
        %1055 = vmatmul.bf16.gmra.mxu0 %v971
        %v1056 = vpop.f32.mrf.mxu0
        %v1057 = vadd.f32 %v941, %v1056
        %v1058 = vpop.f32.mrf.mxu0
        %1059 = vdwg.mxu0
        %v1060 = vadd.f32 %v943, %v983
        %v1061 = vxor.u32 %v1060, 2147483648
        %v1062 = vmul.f32 %v1061, 1.442695
        %v1063 = vpow.pop %v1062
        %v1064 = vadd.f32 %v1063, 1.0
        %v1065 = vrcp.pop %v1064
        %v1066 = vmul.f32 %v1064, %v1065
        %v1067 = vsub.f32 1.0, %v1066
        %v1068 = vmul.f32 %v1065, %v1067
        %v1069 = vadd.f32 %v1065, %v1068
        %vm1070 = vweird.f32 %v1064
        %vm1071 = vweird.f32 %v1065
        %vm1072 = vmor %vm1070, %vm1071
        %v1073 = vsel %vm1072, %v1065, %v1069
        %v1074 = vand.u32 2147483647, %v1064
        %vm1075 = vcmp.eq.f32.partialorder %v1074, 8.507059e+37
        %v1076 = vand.u32 %v1064, 2147483648
        %v1077 = vor.u32 1.1754944e-38, %v1076
        %v1078 = vsel %vm1075, %v1077, %v1073
        %v1079 = vmul.f32 1.0, %v1078
        %v1080 = vadd.f32 %v944, %v1020
        %v1081 = vxor.u32 %v1080, 2147483648
        %v1082 = vmul.f32 %v1081, 1.442695
        %v1083 = vpow.pop %v1082
        %v1084 = vadd.f32 %v1083, 1.0
        %v1085 = vrcp.pop %v1084
        %v1086 = vmul.f32 %v1084, %v1085
        %v1087 = vsub.f32 1.0, %v1086
        %v1088 = vmul.f32 %v1085, %v1087
        %v1089 = vadd.f32 %v1085, %v1088
        %vm1090 = vweird.f32 %v1084
        %vm1091 = vweird.f32 %v1085
        %vm1092 = vmor %vm1090, %vm1091
        %v1093 = vsel %vm1092, %v1085, %v1089
        %v1094 = vand.u32 2147483647, %v1084
        %vm1095 = vcmp.eq.f32.partialorder %v1094, 8.507059e+37
        %v1096 = vand.u32 %v1084, 2147483648
        %v1097 = vor.u32 1.1754944e-38, %v1096
        %v1098 = vsel %vm1095, %v1097, %v1093
        %v1099 = vmul.f32 1.0, %v1098
        %v1100 = vmul.f32 %v1079, %v1057
        %v1101 = vadd.f32 %v945, %v1100
        %v1102 = vtanh.pop %v1101
        %v1103 = vsub.f32 0.0, %v1102
        %v1104 = vmul.f32 %v1099, %v1103
        %v1105 = vadd.f32 %v1102, %v1104
        %v1106 = vld [vmem:[#allocation2 + $0x8] sm:$0xff]
        %v1107 = vld [vmem:[#allocation3 + $0x8] sm:$0xff]
        %v1108 = vld [vmem:[#allocation4 + $0x8] sm:$0xff]
        %v1109 = vpack.c.bf16 %v1105, %v1105
        %v1111 = vsel %vm713, %v1109, 0
        %1113 = vmatpush.bf16.msra.mxu0 0
        %1114 = vmatpush.bf16.msra.mxu0 0
        %1115 = vmatpush.bf16.msra.mxu0 0
        %1116 = vmatpush.bf16.msra.mxu0 0
        %1117 = vmatpush.bf16.msra.mxu0 %v965
        %1118 = vmatpush.bf16.msra.mxu0 %v964
        %1119 = vmatpush.bf16.msra.mxu0 %v963
        %1120 = vmatpush.bf16.msra.mxu0 %v962
        %1121 = vmatmul.bf16.gmra.mxu0 %v1111
        %v1122 = vpop.f32.mrf.mxu0
        %v1123 = vadd.f32 0.0, %v1122
        %v1124 = vpop.f32.mrf.mxu0
        %1125 = vdwg.mxu0
        %1126 = vmatpush.bf16.msra.mxu0 0
        %1127 = vmatpush.bf16.msra.mxu0 0
        %1128 = vmatpush.bf16.msra.mxu0 0
        %1129 = vmatpush.bf16.msra.mxu0 0
        %1130 = vmatpush.bf16.msra.mxu0 %v1005
        %1131 = vmatpush.bf16.msra.mxu0 %v1004
        %1132 = vmatpush.bf16.msra.mxu0 %v1003
        %1133 = vmatpush.bf16.msra.mxu0 %v1002
        %1134 = vmatmul.bf16.gmra.mxu0 %v1111
        %v1135 = vpop.f32.mrf.mxu0
        %v1136 = vadd.f32 0.0, %v1135
        %v1137 = vpop.f32.mrf.mxu0
        %1138 = vdwg.mxu0
        %1139 = vmatpush.bf16.msra.mxu0 0
        %1140 = vmatpush.bf16.msra.mxu0 0
        %1141 = vmatpush.bf16.msra.mxu0 0
        %1142 = vmatpush.bf16.msra.mxu0 0
        %1143 = vmatpush.bf16.msra.mxu0 %v1042
        %1144 = vmatpush.bf16.msra.mxu0 %v1041
        %1145 = vmatpush.bf16.msra.mxu0 %v1040
        %1146 = vmatpush.bf16.msra.mxu0 %v1039
        %1147 = vmatmul.bf16.gmra.mxu0 %v1111
        %v1148 = vpop.f32.mrf.mxu0
        %v1149 = vadd.f32 %v941, %v1148
        %v1150 = vpop.f32.mrf.mxu0
        %1151 = vdwg.mxu0
        %v1152 = vadd.f32 %v1106, %v1123
        %v1153 = vxor.u32 %v1152, 2147483648
        %v1154 = vmul.f32 %v1153, 1.442695
        %v1155 = vpow.pop %v1154
        %v1156 = vadd.f32 %v1155, 1.0
        %v1157 = vrcp.pop %v1156
        %v1158 = vmul.f32 %v1156, %v1157
        %v1159 = vsub.f32 1.0, %v1158
        %v1160 = vmul.f32 %v1157, %v1159
        %v1161 = vadd.f32 %v1157, %v1160
        %vm1162 = vweird.f32 %v1156
        %vm1163 = vweird.f32 %v1157
        %vm1164 = vmor %vm1162, %vm1163
        %v1165 = vsel %vm1164, %v1157, %v1161
        %v1166 = vand.u32 2147483647, %v1156
        %vm1167 = vcmp.eq.f32.partialorder %v1166, 8.507059e+37
        %v1168 = vand.u32 %v1156, 2147483648
        %v1169 = vor.u32 1.1754944e-38, %v1168
        %v1170 = vsel %vm1167, %v1169, %v1165
        %v1171 = vmul.f32 1.0, %v1170
        %v1172 = vadd.f32 %v1107, %v1136
        %v1173 = vxor.u32 %v1172, 2147483648
        %v1174 = vmul.f32 %v1173, 1.442695
        %v1175 = vpow.pop %v1174
        %v1176 = vadd.f32 %v1175, 1.0
        %v1177 = vrcp.pop %v1176
        %v1178 = vmul.f32 %v1176, %v1177
        %v1179 = vsub.f32 1.0, %v1178
        %v1180 = vmul.f32 %v1177, %v1179
        %v1181 = vadd.f32 %v1177, %v1180
        %vm1182 = vweird.f32 %v1176
        %vm1183 = vweird.f32 %v1177
        %vm1184 = vmor %vm1182, %vm1183
        %v1185 = vsel %vm1184, %v1177, %v1181
        %v1186 = vand.u32 2147483647, %v1176
        %vm1187 = vcmp.eq.f32.partialorder %v1186, 8.507059e+37
        %v1188 = vand.u32 %v1176, 2147483648
        %v1189 = vor.u32 1.1754944e-38, %v1188
        %v1190 = vsel %vm1187, %v1189, %v1185
        %v1191 = vmul.f32 1.0, %v1190
        %v1192 = vmul.f32 %v1171, %v1149
        %v1193 = vadd.f32 %v1108, %v1192
        %v1194 = vtanh.pop %v1193
        %v1195 = vsub.f32 %v1105, %v1194
        %v1196 = vmul.f32 %v1191, %v1195
        %v1197 = vadd.f32 %v1194, %v1196
        %v1198 = vld [vmem:[#allocation2 + $0x10] sm:$0xff]
        %v1199 = vld [vmem:[#allocation3 + $0x10] sm:$0xff]
        %v1200 = vld [vmem:[#allocation4 + $0x10] sm:$0xff]
        %v1201 = vpack.c.bf16 %v1197, %v1197
        %v1203 = vsel %vm713, %v1201, 0
        %1205 = vmatpush.bf16.msra.mxu0 0
        %1206 = vmatpush.bf16.msra.mxu0 0
        %1207 = vmatpush.bf16.msra.mxu0 0
        %1208 = vmatpush.bf16.msra.mxu0 0
        %1209 = vmatpush.bf16.msra.mxu0 %v965
        %1210 = vmatpush.bf16.msra.mxu0 %v964
        %1211 = vmatpush.bf16.msra.mxu0 %v963
        %1212 = vmatpush.bf16.msra.mxu0 %v962
        %1213 = vmatmul.bf16.gmra.mxu0 %v1203
        %v1214 = vpop.f32.mrf.mxu0
        %v1215 = vadd.f32 0.0, %v1214
        %v1216 = vpop.f32.mrf.mxu0
        %1217 = vdwg.mxu0
        %1218 = vmatpush.bf16.msra.mxu0 0
        %1219 = vmatpush.bf16.msra.mxu0 0
        %1220 = vmatpush.bf16.msra.mxu0 0
        %1221 = vmatpush.bf16.msra.mxu0 0
        %1222 = vmatpush.bf16.msra.mxu0 %v1005
        %1223 = vmatpush.bf16.msra.mxu0 %v1004
        %1224 = vmatpush.bf16.msra.mxu0 %v1003
        %1225 = vmatpush.bf16.msra.mxu0 %v1002
        %1226 = vmatmul.bf16.gmra.mxu0 %v1203
        %v1227 = vpop.f32.mrf.mxu0
        %v1228 = vadd.f32 0.0, %v1227
        %v1229 = vpop.f32.mrf.mxu0
        %1230 = vdwg.mxu0
        %1231 = vmatpush.bf16.msra.mxu0 0
        %1232 = vmatpush.bf16.msra.mxu0 0
        %1233 = vmatpush.bf16.msra.mxu0 0
        %1234 = vmatpush.bf16.msra.mxu0 0
        %1235 = vmatpush.bf16.msra.mxu0 %v1042
        %1236 = vmatpush.bf16.msra.mxu0 %v1041
        %1237 = vmatpush.bf16.msra.mxu0 %v1040
        %1238 = vmatpush.bf16.msra.mxu0 %v1039
        %1239 = vmatmul.bf16.gmra.mxu0 %v1203
        %v1240 = vpop.f32.mrf.mxu0
        %v1241 = vadd.f32 %v941, %v1240
        %v1242 = vpop.f32.mrf.mxu0
        %1243 = vdwg.mxu0
        %v1244 = vadd.f32 %v1198, %v1215
        %v1245 = vxor.u32 %v1244, 2147483648
        %v1246 = vmul.f32 %v1245, 1.442695
        %v1247 = vpow.pop %v1246
        %v1248 = vadd.f32 %v1247, 1.0
        %v1249 = vrcp.pop %v1248
        %v1250 = vmul.f32 %v1248, %v1249
        %v1251 = vsub.f32 1.0, %v1250
        %v1252 = vmul.f32 %v1249, %v1251
        %v1253 = vadd.f32 %v1249, %v1252
        %vm1254 = vweird.f32 %v1248
        %vm1255 = vweird.f32 %v1249
        %vm1256 = vmor %vm1254, %vm1255
        %v1257 = vsel %vm1256, %v1249, %v1253
        %v1258 = vand.u32 2147483647, %v1248
        %vm1259 = vcmp.eq.f32.partialorder %v1258, 8.507059e+37
        %v1260 = vand.u32 %v1248, 2147483648
        %v1261 = vor.u32 1.1754944e-38, %v1260
        %v1262 = vsel %vm1259, %v1261, %v1257
        %v1263 = vmul.f32 1.0, %v1262
        %v1264 = vadd.f32 %v1199, %v1228
        %v1265 = vxor.u32 %v1264, 2147483648
        %v1266 = vmul.f32 %v1265, 1.442695
        %v1267 = vpow.pop %v1266
        %v1268 = vadd.f32 %v1267, 1.0
        %v1269 = vrcp.pop %v1268
        %v1270 = vmul.f32 %v1268, %v1269
        %v1271 = vsub.f32 1.0, %v1270
        %v1272 = vmul.f32 %v1269, %v1271
        %v1273 = vadd.f32 %v1269, %v1272
        %vm1274 = vweird.f32 %v1268
        %vm1275 = vweird.f32 %v1269
        %vm1276 = vmor %vm1274, %vm1275
        %v1277 = vsel %vm1276, %v1269, %v1273
        %v1278 = vand.u32 2147483647, %v1268
        %vm1279 = vcmp.eq.f32.partialorder %v1278, 8.507059e+37
        %v1280 = vand.u32 %v1268, 2147483648
        %v1281 = vor.u32 1.1754944e-38, %v1280
        %v1282 = vsel %vm1279, %v1281, %v1277
        %v1283 = vmul.f32 1.0, %v1282
        %v1284 = vmul.f32 %v1263, %v1241
        %v1285 = vadd.f32 %v1200, %v1284
        %v1286 = vtanh.pop %v1285
        %v1287 = vsub.f32 %v1197, %v1286
        %v1288 = vmul.f32 %v1283, %v1287
        %v1289 = vadd.f32 %v1286, %v1288
        %v1290 = vld [vmem:[#allocation2 + $0x18] sm:$0xff]
        %v1291 = vld [vmem:[#allocation3 + $0x18] sm:$0xff]
        %v1292 = vld [vmem:[#allocation4 + $0x18] sm:$0xff]
        %v1293 = vpack.c.bf16 %v1289, %v1289
        %v1295 = vsel %vm713, %v1293, 0
        %1297 = vmatpush.bf16.msra.mxu0 0
        %1298 = vmatpush.bf16.msra.mxu0 0
        %1299 = vmatpush.bf16.msra.mxu0 0
        %1300 = vmatpush.bf16.msra.mxu0 0
        %1301 = vmatpush.bf16.msra.mxu0 %v965
        %1302 = vmatpush.bf16.msra.mxu0 %v964
        %1303 = vmatpush.bf16.msra.mxu0 %v963
        %1304 = vmatpush.bf16.msra.mxu0 %v962
        %1305 = vmatmul.bf16.gmra.mxu0 %v1295
        %v1306 = vpop.f32.mrf.mxu0
        %v1307 = vadd.f32 0.0, %v1306
        %v1308 = vpop.f32.mrf.mxu0
        %1309 = vdwg.mxu0
        %1310 = vmatpush.bf16.msra.mxu0 0
        %1311 = vmatpush.bf16.msra.mxu0 0
        %1312 = vmatpush.bf16.msra.mxu0 0
        %1313 = vmatpush.bf16.msra.mxu0 0
        %1314 = vmatpush.bf16.msra.mxu0 %v1005
        %1315 = vmatpush.bf16.msra.mxu0 %v1004
        %1316 = vmatpush.bf16.msra.mxu0 %v1003
        %1317 = vmatpush.bf16.msra.mxu0 %v1002
        %1318 = vmatmul.bf16.gmra.mxu0 %v1295
        %v1319 = vpop.f32.mrf.mxu0
        %v1320 = vadd.f32 0.0, %v1319
        %v1321 = vpop.f32.mrf.mxu0
        %1322 = vdwg.mxu0
        %1323 = vmatpush.bf16.msra.mxu0 0
        %1324 = vmatpush.bf16.msra.mxu0 0
        %1325 = vmatpush.bf16.msra.mxu0 0
        %1326 = vmatpush.bf16.msra.mxu0 0
        %1327 = vmatpush.bf16.msra.mxu0 %v1042
        %1328 = vmatpush.bf16.msra.mxu0 %v1041
        %1329 = vmatpush.bf16.msra.mxu0 %v1040
        %1330 = vmatpush.bf16.msra.mxu0 %v1039
        %1331 = vmatmul.bf16.gmra.mxu0 %v1295
        %v1332 = vpop.f32.mrf.mxu0
        %v1333 = vadd.f32 %v941, %v1332
        %v1334 = vpop.f32.mrf.mxu0
        %1335 = vdwg.mxu0
        %v1336 = vadd.f32 %v1290, %v1307
        %v1337 = vxor.u32 %v1336, 2147483648
        %v1338 = vmul.f32 %v1337, 1.442695
        %v1339 = vpow.pop %v1338
        %v1340 = vadd.f32 %v1339, 1.0
        %v1341 = vrcp.pop %v1340
        %v1342 = vmul.f32 %v1340, %v1341
        %v1343 = vsub.f32 1.0, %v1342
        %v1344 = vmul.f32 %v1341, %v1343
        %v1345 = vadd.f32 %v1341, %v1344
        %vm1346 = vweird.f32 %v1340
        %vm1347 = vweird.f32 %v1341
        %vm1348 = vmor %vm1346, %vm1347
        %v1349 = vsel %vm1348, %v1341, %v1345
        %v1350 = vand.u32 2147483647, %v1340
        %vm1351 = vcmp.eq.f32.partialorder %v1350, 8.507059e+37
        %v1352 = vand.u32 %v1340, 2147483648
        %v1353 = vor.u32 1.1754944e-38, %v1352
        %v1354 = vsel %vm1351, %v1353, %v1349
        %v1355 = vmul.f32 1.0, %v1354
        %v1356 = vadd.f32 %v1291, %v1320
        %v1357 = vxor.u32 %v1356, 2147483648
        %v1358 = vmul.f32 %v1357, 1.442695
        %v1359 = vpow.pop %v1358
        %v1360 = vadd.f32 %v1359, 1.0
        %v1361 = vrcp.pop %v1360
        %v1362 = vmul.f32 %v1360, %v1361
        %v1363 = vsub.f32 1.0, %v1362
        %v1364 = vmul.f32 %v1361, %v1363
        %v1365 = vadd.f32 %v1361, %v1364
        %vm1366 = vweird.f32 %v1360
        %vm1367 = vweird.f32 %v1361
        %vm1368 = vmor %vm1366, %vm1367
        %v1369 = vsel %vm1368, %v1361, %v1365
        %v1370 = vand.u32 2147483647, %v1360
        %vm1371 = vcmp.eq.f32.partialorder %v1370, 8.507059e+37
        %v1372 = vand.u32 %v1360, 2147483648
        %v1373 = vor.u32 1.1754944e-38, %v1372
        %v1374 = vsel %vm1371, %v1373, %v1369
        %v1375 = vmul.f32 1.0, %v1374
        %v1376 = vmul.f32 %v1355, %v1333
        %v1377 = vadd.f32 %v1292, %v1376
        %v1378 = vtanh.pop %v1377
        %v1379 = vsub.f32 %v1289, %v1378
        %v1380 = vmul.f32 %v1375, %v1379
        %v1381 = vadd.f32 %v1378, %v1380
        %v1382 = vld [vmem:[#allocation2 + $0x20] sm:$0xff]
        %v1383 = vld [vmem:[#allocation3 + $0x20] sm:$0xff]
        %v1384 = vld [vmem:[#allocation4 + $0x20] sm:$0xff]
        %v1385 = vpack.c.bf16 %v1381, %v1381
        %v1387 = vsel %vm713, %v1385, 0
        %1389 = vmatpush.bf16.msra.mxu0 0
        %1390 = vmatpush.bf16.msra.mxu0 0
        %1391 = vmatpush.bf16.msra.mxu0 0
        %1392 = vmatpush.bf16.msra.mxu0 0
        %1393 = vmatpush.bf16.msra.mxu0 %v965
        %1394 = vmatpush.bf16.msra.mxu0 %v964
        %1395 = vmatpush.bf16.msra.mxu0 %v963
        %1396 = vmatpush.bf16.msra.mxu0 %v962
        %1397 = vmatmul.bf16.gmra.mxu0 %v1387
        %v1398 = vpop.f32.mrf.mxu0
        %v1399 = vadd.f32 0.0, %v1398
        %v1400 = vpop.f32.mrf.mxu0
        %1401 = vdwg.mxu0
        %1402 = vmatpush.bf16.msra.mxu0 0
        %1403 = vmatpush.bf16.msra.mxu0 0
        %1404 = vmatpush.bf16.msra.mxu0 0
        %1405 = vmatpush.bf16.msra.mxu0 0
        %1406 = vmatpush.bf16.msra.mxu0 %v1005
        %1407 = vmatpush.bf16.msra.mxu0 %v1004
        %1408 = vmatpush.bf16.msra.mxu0 %v1003
        %1409 = vmatpush.bf16.msra.mxu0 %v1002
        %1410 = vmatmul.bf16.gmra.mxu0 %v1387
        %v1411 = vpop.f32.mrf.mxu0
        %v1412 = vadd.f32 0.0, %v1411
        %v1413 = vpop.f32.mrf.mxu0
        %1414 = vdwg.mxu0
        %1415 = vmatpush.bf16.msra.mxu0 0
        %1416 = vmatpush.bf16.msra.mxu0 0
        %1417 = vmatpush.bf16.msra.mxu0 0
        %1418 = vmatpush.bf16.msra.mxu0 0
        %1419 = vmatpush.bf16.msra.mxu0 %v1042
        %1420 = vmatpush.bf16.msra.mxu0 %v1041
        %1421 = vmatpush.bf16.msra.mxu0 %v1040
        %1422 = vmatpush.bf16.msra.mxu0 %v1039
        %1423 = vmatmul.bf16.gmra.mxu0 %v1387
        %v1424 = vpop.f32.mrf.mxu0
        %v1425 = vadd.f32 %v941, %v1424
        %v1426 = vpop.f32.mrf.mxu0
        %1427 = vdwg.mxu0
        %v1428 = vadd.f32 %v1382, %v1399
        %v1429 = vxor.u32 %v1428, 2147483648
        %v1430 = vmul.f32 %v1429, 1.442695
        %v1431 = vpow.pop %v1430
        %v1432 = vadd.f32 %v1431, 1.0
        %v1433 = vrcp.pop %v1432
        %v1434 = vmul.f32 %v1432, %v1433
        %v1435 = vsub.f32 1.0, %v1434
        %v1436 = vmul.f32 %v1433, %v1435
        %v1437 = vadd.f32 %v1433, %v1436
        %vm1438 = vweird.f32 %v1432
        %vm1439 = vweird.f32 %v1433
        %vm1440 = vmor %vm1438, %vm1439
        %v1441 = vsel %vm1440, %v1433, %v1437
        %v1442 = vand.u32 2147483647, %v1432
        %vm1443 = vcmp.eq.f32.partialorder %v1442, 8.507059e+37
        %v1444 = vand.u32 %v1432, 2147483648
        %v1445 = vor.u32 1.1754944e-38, %v1444
        %v1446 = vsel %vm1443, %v1445, %v1441
        %v1447 = vmul.f32 1.0, %v1446
        %v1448 = vadd.f32 %v1383, %v1412
        %v1449 = vxor.u32 %v1448, 2147483648
        %v1450 = vmul.f32 %v1449, 1.442695
        %v1451 = vpow.pop %v1450
        %v1452 = vadd.f32 %v1451, 1.0
        %v1453 = vrcp.pop %v1452
        %v1454 = vmul.f32 %v1452, %v1453
        %v1455 = vsub.f32 1.0, %v1454
        %v1456 = vmul.f32 %v1453, %v1455
        %v1457 = vadd.f32 %v1453, %v1456
        %vm1458 = vweird.f32 %v1452
        %vm1459 = vweird.f32 %v1453
        %vm1460 = vmor %vm1458, %vm1459
        %v1461 = vsel %vm1460, %v1453, %v1457
        %v1462 = vand.u32 2147483647, %v1452
        %vm1463 = vcmp.eq.f32.partialorder %v1462, 8.507059e+37
        %v1464 = vand.u32 %v1452, 2147483648
        %v1465 = vor.u32 1.1754944e-38, %v1464
        %v1466 = vsel %vm1463, %v1465, %v1461
        %v1467 = vmul.f32 1.0, %v1466
        %v1468 = vmul.f32 %v1447, %v1425
        %v1469 = vadd.f32 %v1384, %v1468
        %v1470 = vtanh.pop %v1469
        %v1471 = vsub.f32 %v1381, %v1470
        %v1472 = vmul.f32 %v1467, %v1471
        %v1473 = vadd.f32 %v1470, %v1472
        %v1474 = vld [vmem:[#allocation2 + $0x28] sm:$0xff]
        %v1475 = vld [vmem:[#allocation3 + $0x28] sm:$0xff]
        %v1476 = vld [vmem:[#allocation4 + $0x28] sm:$0xff]
        %v1477 = vpack.c.bf16 %v1473, %v1473
        %v1479 = vsel %vm713, %v1477, 0
        %1481 = vmatpush.bf16.msra.mxu0 0
        %1482 = vmatpush.bf16.msra.mxu0 0
        %1483 = vmatpush.bf16.msra.mxu0 0
        %1484 = vmatpush.bf16.msra.mxu0 0
        %1485 = vmatpush.bf16.msra.mxu0 %v965
        %1486 = vmatpush.bf16.msra.mxu0 %v964
        %1487 = vmatpush.bf16.msra.mxu0 %v963
        %1488 = vmatpush.bf16.msra.mxu0 %v962
        %1489 = vmatmul.bf16.gmra.mxu0 %v1479
        %v1490 = vpop.f32.mrf.mxu0
        %v1491 = vadd.f32 0.0, %v1490
        %v1492 = vpop.f32.mrf.mxu0
        %1493 = vdwg.mxu0
        %1494 = vmatpush.bf16.msra.mxu0 0
        %1495 = vmatpush.bf16.msra.mxu0 0
        %1496 = vmatpush.bf16.msra.mxu0 0
        %1497 = vmatpush.bf16.msra.mxu0 0
        %1498 = vmatpush.bf16.msra.mxu0 %v1005
        %1499 = vmatpush.bf16.msra.mxu0 %v1004
        %1500 = vmatpush.bf16.msra.mxu0 %v1003
        %1501 = vmatpush.bf16.msra.mxu0 %v1002
        %1502 = vmatmul.bf16.gmra.mxu0 %v1479
        %v1503 = vpop.f32.mrf.mxu0
        %v1504 = vadd.f32 0.0, %v1503
        %v1505 = vpop.f32.mrf.mxu0
        %1506 = vdwg.mxu0
        %1507 = vmatpush.bf16.msra.mxu0 0
        %1508 = vmatpush.bf16.msra.mxu0 0
        %1509 = vmatpush.bf16.msra.mxu0 0
        %1510 = vmatpush.bf16.msra.mxu0 0
        %1511 = vmatpush.bf16.msra.mxu0 %v1042
        %1512 = vmatpush.bf16.msra.mxu0 %v1041
        %1513 = vmatpush.bf16.msra.mxu0 %v1040
        %1514 = vmatpush.bf16.msra.mxu0 %v1039
        %1515 = vmatmul.bf16.gmra.mxu0 %v1479
        %v1516 = vpop.f32.mrf.mxu0
        %v1517 = vadd.f32 %v941, %v1516
        %v1518 = vpop.f32.mrf.mxu0
        %1519 = vdwg.mxu0
        %v1520 = vadd.f32 %v1474, %v1491
        %v1521 = vxor.u32 %v1520, 2147483648
        %v1522 = vmul.f32 %v1521, 1.442695
        %v1523 = vpow.pop %v1522
        %v1524 = vadd.f32 %v1523, 1.0
        %v1525 = vrcp.pop %v1524
        %v1526 = vmul.f32 %v1524, %v1525
        %v1527 = vsub.f32 1.0, %v1526
        %v1528 = vmul.f32 %v1525, %v1527
        %v1529 = vadd.f32 %v1525, %v1528
        %vm1530 = vweird.f32 %v1524
        %vm1531 = vweird.f32 %v1525
        %vm1532 = vmor %vm1530, %vm1531
        %v1533 = vsel %vm1532, %v1525, %v1529
        %v1534 = vand.u32 2147483647, %v1524
        %vm1535 = vcmp.eq.f32.partialorder %v1534, 8.507059e+37
        %v1536 = vand.u32 %v1524, 2147483648
        %v1537 = vor.u32 1.1754944e-38, %v1536
        %v1538 = vsel %vm1535, %v1537, %v1533
        %v1539 = vmul.f32 1.0, %v1538
        %v1540 = vadd.f32 %v1475, %v1504
        %v1541 = vxor.u32 %v1540, 2147483648
        %v1542 = vmul.f32 %v1541, 1.442695
        %v1543 = vpow.pop %v1542
        %v1544 = vadd.f32 %v1543, 1.0
        %v1545 = vrcp.pop %v1544
        %v1546 = vmul.f32 %v1544, %v1545
        %v1547 = vsub.f32 1.0, %v1546
        %v1548 = vmul.f32 %v1545, %v1547
        %v1549 = vadd.f32 %v1545, %v1548
        %vm1550 = vweird.f32 %v1544
        %vm1551 = vweird.f32 %v1545
        %vm1552 = vmor %vm1550, %vm1551
        %v1553 = vsel %vm1552, %v1545, %v1549
        %v1554 = vand.u32 2147483647, %v1544
        %vm1555 = vcmp.eq.f32.partialorder %v1554, 8.507059e+37
        %v1556 = vand.u32 %v1544, 2147483648
        %v1557 = vor.u32 1.1754944e-38, %v1556
        %v1558 = vsel %vm1555, %v1557, %v1553
        %v1559 = vmul.f32 1.0, %v1558
        %v1560 = vmul.f32 %v1539, %v1517
        %v1561 = vadd.f32 %v1476, %v1560
        %v1562 = vtanh.pop %v1561
        %v1563 = vsub.f32 %v1473, %v1562
        %v1564 = vmul.f32 %v1559, %v1563
        %v1565 = vadd.f32 %v1562, %v1564
        %v1566 = vld [vmem:[#allocation2 + $0x30] sm:$0xff]
        %v1567 = vld [vmem:[#allocation3 + $0x30] sm:$0xff]
        %v1568 = vld [vmem:[#allocation4 + $0x30] sm:$0xff]
        %v1569 = vpack.c.bf16 %v1565, %v1565
        %v1571 = vsel %vm713, %v1569, 0
        %1573 = vmatpush.bf16.msra.mxu0 0
        %1574 = vmatpush.bf16.msra.mxu0 0
        %1575 = vmatpush.bf16.msra.mxu0 0
        %1576 = vmatpush.bf16.msra.mxu0 0
        %1577 = vmatpush.bf16.msra.mxu0 %v965
        %1578 = vmatpush.bf16.msra.mxu0 %v964
        %1579 = vmatpush.bf16.msra.mxu0 %v963
        %1580 = vmatpush.bf16.msra.mxu0 %v962
        %1581 = vmatmul.bf16.gmra.mxu0 %v1571
        %v1582 = vpop.f32.mrf.mxu0
        %v1583 = vadd.f32 0.0, %v1582
        %v1584 = vpop.f32.mrf.mxu0
        %1585 = vdwg.mxu0
        %1586 = vmatpush.bf16.msra.mxu0 0
        %1587 = vmatpush.bf16.msra.mxu0 0
        %1588 = vmatpush.bf16.msra.mxu0 0
        %1589 = vmatpush.bf16.msra.mxu0 0
        %1590 = vmatpush.bf16.msra.mxu0 %v1005
        %1591 = vmatpush.bf16.msra.mxu0 %v1004
        %1592 = vmatpush.bf16.msra.mxu0 %v1003
        %1593 = vmatpush.bf16.msra.mxu0 %v1002
        %1594 = vmatmul.bf16.gmra.mxu0 %v1571
        %v1595 = vpop.f32.mrf.mxu0
        %v1596 = vadd.f32 0.0, %v1595
        %v1597 = vpop.f32.mrf.mxu0
        %1598 = vdwg.mxu0
        %1599 = vmatpush.bf16.msra.mxu0 0
        %1600 = vmatpush.bf16.msra.mxu0 0
        %1601 = vmatpush.bf16.msra.mxu0 0
        %1602 = vmatpush.bf16.msra.mxu0 0
        %1603 = vmatpush.bf16.msra.mxu0 %v1042
        %1604 = vmatpush.bf16.msra.mxu0 %v1041
        %1605 = vmatpush.bf16.msra.mxu0 %v1040
        %1606 = vmatpush.bf16.msra.mxu0 %v1039
        %1607 = vmatmul.bf16.gmra.mxu0 %v1571
        %v1608 = vpop.f32.mrf.mxu0
        %v1609 = vadd.f32 %v941, %v1608
        %v1610 = vpop.f32.mrf.mxu0
        %1611 = vdwg.mxu0
        %v1612 = vadd.f32 %v1566, %v1583
        %v1613 = vxor.u32 %v1612, 2147483648
        %v1614 = vmul.f32 %v1613, 1.442695
        %v1615 = vpow.pop %v1614
        %v1616 = vadd.f32 %v1615, 1.0
        %v1617 = vrcp.pop %v1616
        %v1618 = vmul.f32 %v1616, %v1617
        %v1619 = vsub.f32 1.0, %v1618
        %v1620 = vmul.f32 %v1617, %v1619
        %v1621 = vadd.f32 %v1617, %v1620
        %vm1622 = vweird.f32 %v1616
        %vm1623 = vweird.f32 %v1617
        %vm1624 = vmor %vm1622, %vm1623
        %v1625 = vsel %vm1624, %v1617, %v1621
        %v1626 = vand.u32 2147483647, %v1616
        %vm1627 = vcmp.eq.f32.partialorder %v1626, 8.507059e+37
        %v1628 = vand.u32 %v1616, 2147483648
        %v1629 = vor.u32 1.1754944e-38, %v1628
        %v1630 = vsel %vm1627, %v1629, %v1625
        %v1631 = vmul.f32 1.0, %v1630
        %v1632 = vadd.f32 %v1567, %v1596
        %v1633 = vxor.u32 %v1632, 2147483648
        %v1634 = vmul.f32 %v1633, 1.442695
        %v1635 = vpow.pop %v1634
        %v1636 = vadd.f32 %v1635, 1.0
        %v1637 = vrcp.pop %v1636
        %v1638 = vmul.f32 %v1636, %v1637
        %v1639 = vsub.f32 1.0, %v1638
        %v1640 = vmul.f32 %v1637, %v1639
        %v1641 = vadd.f32 %v1637, %v1640
        %vm1642 = vweird.f32 %v1636
        %vm1643 = vweird.f32 %v1637
        %vm1644 = vmor %vm1642, %vm1643
        %v1645 = vsel %vm1644, %v1637, %v1641
        %v1646 = vand.u32 2147483647, %v1636
        %vm1647 = vcmp.eq.f32.partialorder %v1646, 8.507059e+37
        %v1648 = vand.u32 %v1636, 2147483648
        %v1649 = vor.u32 1.1754944e-38, %v1648
        %v1650 = vsel %vm1647, %v1649, %v1645
        %v1651 = vmul.f32 1.0, %v1650
        %v1652 = vmul.f32 %v1631, %v1609
        %v1653 = vadd.f32 %v1568, %v1652
        %v1654 = vtanh.pop %v1653
        %v1655 = vsub.f32 %v1565, %v1654
        %v1656 = vmul.f32 %v1651, %v1655
        %v1657 = vadd.f32 %v1654, %v1656
        %v1658 = vld [vmem:[#allocation2 + $0x38] sm:$0xff]
        %v1659 = vld [vmem:[#allocation3 + $0x38] sm:$0xff]
        %v1660 = vld [vmem:[#allocation4 + $0x38] sm:$0xff]
        %v1661 = vpack.c.bf16 %v1657, %v1657
        %v1663 = vsel %vm713, %v1661, 0
        %1665 = vmatpush.bf16.msra.mxu0 0
        %1666 = vmatpush.bf16.msra.mxu0 0
        %1667 = vmatpush.bf16.msra.mxu0 0
        %1668 = vmatpush.bf16.msra.mxu0 0
        %1669 = vmatpush.bf16.msra.mxu0 %v965
        %1670 = vmatpush.bf16.msra.mxu0 %v964
        %1671 = vmatpush.bf16.msra.mxu0 %v963
        %1672 = vmatpush.bf16.msra.mxu0 %v962
        %1673 = vmatmul.bf16.gmra.mxu0 %v1663
        %v1674 = vpop.f32.mrf.mxu0
        %v1675 = vadd.f32 0.0, %v1674
        %v1676 = vpop.f32.mrf.mxu0
        %1677 = vdwg.mxu0
        %1678 = vmatpush.bf16.msra.mxu0 0
        %1679 = vmatpush.bf16.msra.mxu0 0
        %1680 = vmatpush.bf16.msra.mxu0 0
        %1681 = vmatpush.bf16.msra.mxu0 0
        %1682 = vmatpush.bf16.msra.mxu0 %v1005
        %1683 = vmatpush.bf16.msra.mxu0 %v1004
        %1684 = vmatpush.bf16.msra.mxu0 %v1003
        %1685 = vmatpush.bf16.msra.mxu0 %v1002
        %1686 = vmatmul.bf16.gmra.mxu0 %v1663
        %v1687 = vpop.f32.mrf.mxu0
        %v1688 = vadd.f32 0.0, %v1687
        %v1689 = vpop.f32.mrf.mxu0
        %1690 = vdwg.mxu0
        %1691 = vmatpush.bf16.msra.mxu0 0
        %1692 = vmatpush.bf16.msra.mxu0 0
        %1693 = vmatpush.bf16.msra.mxu0 0
        %1694 = vmatpush.bf16.msra.mxu0 0
        %1695 = vmatpush.bf16.msra.mxu0 %v1042
        %1696 = vmatpush.bf16.msra.mxu0 %v1041
        %1697 = vmatpush.bf16.msra.mxu0 %v1040
        %1698 = vmatpush.bf16.msra.mxu0 %v1039
        %1699 = vmatmul.bf16.gmra.mxu0 %v1663
        %v1700 = vpop.f32.mrf.mxu0
        %v1701 = vadd.f32 %v941, %v1700
        %v1702 = vpop.f32.mrf.mxu0
        %1703 = vdwg.mxu0
        %v1704 = vadd.f32 %v1658, %v1675
        %v1705 = vxor.u32 %v1704, 2147483648
        %v1706 = vmul.f32 %v1705, 1.442695
        %v1707 = vpow.pop %v1706
        %v1708 = vadd.f32 %v1707, 1.0
        %v1709 = vrcp.pop %v1708
        %v1710 = vmul.f32 %v1708, %v1709
        %v1711 = vsub.f32 1.0, %v1710
        %v1712 = vmul.f32 %v1709, %v1711
        %v1713 = vadd.f32 %v1709, %v1712
        %vm1714 = vweird.f32 %v1708
        %vm1715 = vweird.f32 %v1709
        %vm1716 = vmor %vm1714, %vm1715
        %v1717 = vsel %vm1716, %v1709, %v1713
        %v1718 = vand.u32 2147483647, %v1708
        %vm1719 = vcmp.eq.f32.partialorder %v1718, 8.507059e+37
        %v1720 = vand.u32 %v1708, 2147483648
        %v1721 = vor.u32 1.1754944e-38, %v1720
        %v1722 = vsel %vm1719, %v1721, %v1717
        %v1723 = vmul.f32 1.0, %v1722
        %v1724 = vadd.f32 %v1659, %v1688
        %v1725 = vxor.u32 %v1724, 2147483648
        %v1726 = vmul.f32 %v1725, 1.442695
        %v1727 = vpow.pop %v1726
        %v1728 = vadd.f32 %v1727, 1.0
        %v1729 = vrcp.pop %v1728
        %v1730 = vmul.f32 %v1728, %v1729
        %v1731 = vsub.f32 1.0, %v1730
        %v1732 = vmul.f32 %v1729, %v1731
        %v1733 = vadd.f32 %v1729, %v1732
        %vm1734 = vweird.f32 %v1728
        %vm1735 = vweird.f32 %v1729
        %vm1736 = vmor %vm1734, %vm1735
        %v1737 = vsel %vm1736, %v1729, %v1733
        %v1738 = vand.u32 2147483647, %v1728
        %vm1739 = vcmp.eq.f32.partialorder %v1738, 8.507059e+37
        %v1740 = vand.u32 %v1728, 2147483648
        %v1741 = vor.u32 1.1754944e-38, %v1740
        %v1742 = vsel %vm1739, %v1741, %v1737
        %v1743 = vmul.f32 1.0, %v1742
        %v1744 = vmul.f32 %v1723, %v1701
        %v1745 = vadd.f32 %v1660, %v1744
        %v1746 = vtanh.pop %v1745
        %v1747 = vsub.f32 %v1657, %v1746
        %v1748 = vmul.f32 %v1743, %v1747
        %v1749 = vadd.f32 %v1746, %v1748
        %v1750 = vsel %vm713, %v1749, 0.0
        %1751 = vst [vmem:[%s382] sm:$0xff] %v1750
        %s1752 = sand.u32 %s214, 1
        %s1753 = scalar_lea.sflag [#allocation7], %s1752
        %s1754 = sand.u32 %s214, 1
        %s1755 = smul.addr %s1754, 8
        %s1756 = scalar_lea.vmem [#allocation8], %s1755
        // Predicated region
        $region53: #{tpu_custom_call.1} parent=47 // pred_check
          %p1757 = pneg %p224
        $region54: #{tpu_custom_call.1} parent=47 // pred_check_branch
          %1759 = sbr.rel (%p1757) target = $region56
        $region55: #{tpu_custom_call.1} parent=47 // pred_region
          %1761 = vsyncadd %s1753, 0
          %s1762 = smul.addr %s24, 8
          %s1763 = scalar_lea.hbm %s7, %s1762
          %s1765 = sshll.u32 %s1756, 4
          %s1766 = int_to_ptr.vmem [resolvable:$true] %s1765
          %s1767 = sshll.u32 %s1763, 4
          %s1768 = int_to_ptr.hbm [resolvable:$true] %s1767
          %1770 = dma.vmem_to_hbm [thread:$0]  %s1766, 128, %s1768, %s1753
        $region56: #{tpu_custom_call.1} parent=47 // pred_fallthru
          _
      $region48: #{tpu_custom_call.1} parent=5 // pred_fallthru
        _
      %p1771 = scmp.le.s32.totalorder 2, %s19
      // Predicated region
      $region57: #{tpu_custom_call.1} parent=5 // pred_check
        %p1772 = pneg %p1771
      $region58: #{tpu_custom_call.1} parent=5 // pred_check_branch
        %1774 = sbr.rel (%p1772) target = $region60
      $region59: #{tpu_custom_call.1} parent=5 // pred_region
        %s1775 = ssub.s32 %s19, 2
        // Predicated region
        $region61: #{tpu_custom_call.1} parent=59 // pred_check
          %p1776 = pneg %p230
        $region62: #{tpu_custom_call.1} parent=59 // pred_check_branch
          %1778 = sbr.rel (%p1776) target = $region64
        $region63: #{tpu_custom_call.1} parent=59 // pred_region
          %s1779 = sand.u32 %s215, 1
          %s1780 = scalar_lea.sflag [#allocation7], %s1779
          %s1781 = sand.u32 %s215, 1
          %s1782 = smul.addr %s1781, 8
          %s1783 = scalar_lea.vmem [#allocation8], %s1782
          %1785 = dma.done %s1780, 128
        $region64: #{tpu_custom_call.1} parent=59 // pred_fallthru
          _
      $region60: #{tpu_custom_call.1} parent=5 // pred_fallthru
        _
    $region6: #{tpu_custom_call.1} parent=1 // loop_footer
      %s23 = sadd.s32 1, %s19
    $region7: #{tpu_custom_call.1} parent=1 // loop_footer_branch
      %18 = sbr.rel target = $region3
    $region8: #{tpu_custom_call.1} parent=1 // loop_exit
      _
    %1786 = vsyncpa [#allocation6], 1
    %s1787 = scalar_lea.sflag [#allocation6], 1
    %1788 = vsyncpa %s1787, 1
    %1789 = vsyncpa [#allocation7], 1
    %s1790 = scalar_lea.sflag [#allocation7], 1
    %1791 = vsyncpa %s1790, 1

</llo_original>
